<compile_context>
chip_gen: v7x
topology: tpu7x:2x2x1
jax: 0.10.0
libtpu: 0.0.40
codegen_flags: <defaults>
</compile_context>

<pallas_src>
import jax
import jax.numpy as jnp
from jax import lax
from jax.experimental import pallas as pl
from jax.experimental.pallas import tpu as pltpu

INPUT_SIZE = 1
HIDDEN_SIZE = 20
NUM_LAYERS = 2  # num_stacked_layers

# Explicit MXU precision choice (review): DEFAULT = bf16 operands / f32 acc.
# Use lax.Precision.HIGHEST if bit-level fidelity to PyTorch f32 is required.
_DOT_PRECISION = lax.Precision.DEFAULT


def _rnn_kernel(x_ref, wih0_ref, whh0_ref, b0_ref,
                wih1_ref, whh1_ref, b1_ref, wfc_ref, bfc_ref,
                out_ref):
    T = x_ref.shape[0]
    B = out_ref.shape[0]
    H = whh0_ref.shape[0]

    # Weights live in a handful of vregs.
    whh0 = whh0_ref[...]   # (H, H)
    wih1 = wih1_ref[...]   # (H, H)
    whh1 = whh1_ref[...]   # (H, H)
    b1 = b1_ref[...]       # (1, H)   -- b_ih1 + b_hh1

    # Hoisted input projection: all T broadcast-multiplies + bias adds done
    # once, off the serial chain.  (T, B, 1) * (1, H) + (1, H) -> (T, B, H)
    u = x_ref[...] * wih0_ref[...] + b0_ref[...]

    # Hidden carries are plain vreg values (no VMEM traffic on the chain).
    h0 = jnp.zeros((B, H), jnp.float32)
    h1 = jnp.zeros((B, H), jnp.float32)

    def dot(a, b):
        return jnp.dot(a, b, preferred_element_type=jnp.float32,
                       precision=_DOT_PRECISION)

    # T is small and static -> fully unrolled recurrence in one invocation.
    # TODO(synk): for long sequences switch to lax.fori_loop(unroll=4..8) with
    # h carries in VMEM scratch and stream x over a time-grid axis instead of
    # holding it all resident (matters first on v7x's 64 MiB VMEM).
    for t in range(T):
        # Layer 0: one (B,H)@(H,H) MXU dot + tanh (input term precomputed).
        h0 = jnp.tanh(u[t] + dot(h0, whh0))
        # Layer 1: two dots; dot(h1_prev, whh1) is independent of this step's
        # h0, so it overlaps layer 0's dot+tanh instead of serializing.
        h1 = jnp.tanh(dot(h0, wih1) + dot(h1, whh1) + b1)

    # fc head once, after the loop: elementwise multiply + lane reduction
    # (== fc(out[:, -1, :])).
    out_ref[...] = (
        jnp.sum(h1 * wfc_ref[...], axis=-1, keepdims=True) + bfc_ref[...]
    )


@jax.jit
def simple_rnn_forward(x, params):
    """x: (B, T, INPUT_SIZE) float32 (batch_first, like PyTorch). Returns (B, 1)."""
    B, T, I = x.shape
    wih0, whh0, b0, wih1, whh1, b1, wfc, bfc = params

    x_tbi = jnp.transpose(x, (1, 0, 2))   # (T, B, I) time-major; fuses under jit

    vmem = pl.BlockSpec(memory_space=pltpu.MemorySpace.VMEM)
    # TODO(synk): for large batches add a leading batch grid axis marked
    # "parallel" so v7x's second TensorCore runs half the batch's recurrence.
    return pl.pallas_call(
        _rnn_kernel,
        out_shape=jax.ShapeDtypeStruct((B, 1), jnp.float32),
        in_specs=[vmem] * 9,
        out_specs=vmem,
    )(x_tbi, wih0, whh0, b0, wih1, whh1, b1, wfc, bfc)


def init_params(key):
    """Deterministic init mimicking PyTorch's U(-1/sqrt(H), 1/sqrt(H)).

    Weights are stored kernel-ready: RNN weights pre-transposed to (in, out),
    fc weight kept as a (1, H) row.  (Loading a real PyTorch checkpoint
    requires transposing weight_ih_l*, weight_hh_l*; fc.weight is already (1,H).)
    """
    H, I = HIDDEN_SIZE, INPUT_SIZE
    k = 1.0 / jnp.sqrt(jnp.float32(H))
    keys = jax.random.split(key, 10)
    u = lambda kk, shape: jax.random.uniform(kk, shape, jnp.float32, -k, k)

    wih0 = u(keys[0], (I, H))                       # weight_ih_l0.T
    whh0 = u(keys[1], (H, H))                       # weight_hh_l0.T
    b0 = u(keys[2], (1, H)) + u(keys[3], (1, H))    # b_ih0 + b_hh0
    wih1 = u(keys[4], (H, H))                       # weight_ih_l1.T
    whh1 = u(keys[5], (H, H))                       # weight_hh_l1.T
    b1 = u(keys[6], (1, H)) + u(keys[7], (1, H))    # b_ih1 + b_hh1
    wfc = u(keys[8], (1, H))                        # fc.weight (row)
    bfc = u(keys[9], (1, 1))                        # fc.bias
    return (wih0, whh0, b0, wih1, whh1, b1, wfc, bfc)


def reference_forward(x, params):
    """Pure-JAX reference of the same forward pass (for verification)."""
    wih0, whh0, b0, wih1, whh1, b1, wfc, bfc = params
    B = x.shape[0]
    H = HIDDEN_SIZE

    def dot(a, b):
        return jnp.dot(a, b, preferred_element_type=jnp.float32,
                       precision=_DOT_PRECISION)

    def step(carry, x_t):
        h0, h1 = carry
        h0n = jnp.tanh(dot(x_t, wih0) + dot(h0, whh0) + b0)
        h1n = jnp.tanh(dot(h0n, wih1) + dot(h1, whh1) + b1)
        return (h0n, h1n), None

    init = (jnp.zeros((B, H), jnp.float32), jnp.zeros((B, H), jnp.float32))
    (h0, h1), _ = lax.scan(step, init, jnp.transpose(x, (1, 0, 2)))
    return jnp.sum(h1 * wfc, axis=-1, keepdims=True) + bfc


if __name__ == "__main__":
    key = jax.random.PRNGKey(0)
    pkey, xkey = jax.random.split(key)
    params = init_params(pkey)

    B, T = 8, 8  # small batch / sequence; input_size = 1 as in the module
    x = jax.random.normal(xkey, (B, T, INPUT_SIZE), dtype=jnp.float32)

    out = jax.block_until_ready(simple_rnn_forward(x, params))
    ref = jax.block_until_ready(reference_forward(x, params))

    assert out.shape == (B, 1)
    assert jnp.allclose(out, ref, atol=1e-4, rtol=1e-4), (out, ref)

    print("KERNEL_OK")
</pallas_src>

<mosaic_0001>
module attributes {stable_mosaic.version = 11 : i64} {
  func.func @_rnn_kernel(%arg0: memref<8x8x1xf32, #tpu.memory_space<vmem>>, %arg1: memref<1x20xf32, #tpu.memory_space<vmem>>, %arg2: memref<20x20xf32, #tpu.memory_space<vmem>>, %arg3: memref<1x20xf32, #tpu.memory_space<vmem>>, %arg4: memref<20x20xf32, #tpu.memory_space<vmem>>, %arg5: memref<20x20xf32, #tpu.memory_space<vmem>>, %arg6: memref<1x20xf32, #tpu.memory_space<vmem>>, %arg7: memref<1x20xf32, #tpu.memory_space<vmem>>, %arg8: memref<1x1xf32, #tpu.memory_space<vmem>>, %arg9: memref<8x1xf32, #tpu.memory_space<vmem>>) attributes {dimension_semantics = [], scalar_prefetch = 0 : i64, scratch_operands = 0 : i64, tpu.core_type = #tpu.core_type<tc>} {
    %c0 = arith.constant 0 : index
    %c0_0 = arith.constant 0 : index
    %0 = vector.load %arg2[%c0, %c0_0] : memref<20x20xf32, #tpu.memory_space<vmem>>, vector<20x20xf32>
    %c0_1 = arith.constant 0 : index
    %c0_2 = arith.constant 0 : index
    %1 = vector.load %arg4[%c0_1, %c0_2] : memref<20x20xf32, #tpu.memory_space<vmem>>, vector<20x20xf32>
    %c0_3 = arith.constant 0 : index
    %c0_4 = arith.constant 0 : index
    %2 = vector.load %arg5[%c0_3, %c0_4] : memref<20x20xf32, #tpu.memory_space<vmem>>, vector<20x20xf32>
    %c0_5 = arith.constant 0 : index
    %c0_6 = arith.constant 0 : index
    %3 = vector.load %arg6[%c0_5, %c0_6] : memref<1x20xf32, #tpu.memory_space<vmem>>, vector<1x20xf32>
    %c0_7 = arith.constant 0 : index
    %c0_8 = arith.constant 0 : index
    %c0_9 = arith.constant 0 : index
    %4 = vector.load %arg0[%c0_7, %c0_8, %c0_9] : memref<8x8x1xf32, #tpu.memory_space<vmem>>, vector<8x8x1xf32>
    %c0_10 = arith.constant 0 : index
    %c0_11 = arith.constant 0 : index
    %5 = vector.load %arg1[%c0_10, %c0_11] : memref<1x20xf32, #tpu.memory_space<vmem>>, vector<1x20xf32>
    %6 = vector.shape_cast %5 : vector<1x20xf32> to vector<1x1x20xf32>
    %7 = vector.broadcast %4 : vector<8x8x1xf32> to vector<8x8x20xf32>
    %8 = vector.broadcast %6 : vector<1x1x20xf32> to vector<8x8x20xf32>
    %9 = arith.mulf %7, %8 : vector<8x8x20xf32>
    %c0_12 = arith.constant 0 : index
    %c0_13 = arith.constant 0 : index
    %10 = vector.load %arg3[%c0_12, %c0_13] : memref<1x20xf32, #tpu.memory_space<vmem>>, vector<1x20xf32>
    %11 = vector.shape_cast %10 : vector<1x20xf32> to vector<1x1x20xf32>
    %12 = vector.broadcast %11 : vector<1x1x20xf32> to vector<8x8x20xf32>
    %13 = arith.addf %9, %12 : vector<8x8x20xf32>
    %cst = arith.constant 0.000000e+00 : f32
    %14 = vector.broadcast %cst : f32 to vector<8x20xf32>
    %cst_14 = arith.constant 0.000000e+00 : f32
    %15 = vector.broadcast %cst_14 : f32 to vector<8x20xf32>
    %16 = vector.extract_strided_slice %13 {offsets = [0, 0, 0], sizes = [1, 8, 20], strides = [1, 1, 1]} : vector<8x8x20xf32> to vector<1x8x20xf32>
    %17 = vector.shape_cast %16 : vector<1x8x20xf32> to vector<8x20xf32>
    %cst_15 = arith.constant dense<0.000000e+00> : vector<8x20xf32>
    %18 = tpu.matmul %14, %0, %cst_15 {dimension_numbers = #tpu.dot_dimension_numbers<[1], [0], [0], [1], [0, 0, 1, 1], [], []>} : vector<8x20xf32>, vector<20x20xf32>, vector<8x20xf32> -> vector<8x20xf32>
    %19 = arith.addf %17, %18 : vector<8x20xf32>
    %20 = math.tanh %19 : vector<8x20xf32>
    %cst_16 = arith.constant dense<0.000000e+00> : vector<8x20xf32>
    %21 = tpu.matmul %20, %1, %cst_16 {dimension_numbers = #tpu.dot_dimension_numbers<[1], [0], [0], [1], [0, 0, 1, 1], [], []>} : vector<8x20xf32>, vector<20x20xf32>, vector<8x20xf32> -> vector<8x20xf32>
    %cst_17 = arith.constant dense<0.000000e+00> : vector<8x20xf32>
    %22 = tpu.matmul %15, %2, %cst_17 {dimension_numbers = #tpu.dot_dimension_numbers<[1], [0], [0], [1], [0, 0, 1, 1], [], []>} : vector<8x20xf32>, vector<20x20xf32>, vector<8x20xf32> -> vector<8x20xf32>
    %23 = arith.addf %21, %22 : vector<8x20xf32>
    %24 = vector.broadcast %3 : vector<1x20xf32> to vector<8x20xf32>
    %25 = arith.addf %23, %24 : vector<8x20xf32>
    %26 = math.tanh %25 : vector<8x20xf32>
    %27 = vector.extract_strided_slice %13 {offsets = [1, 0, 0], sizes = [1, 8, 20], strides = [1, 1, 1]} : vector<8x8x20xf32> to vector<1x8x20xf32>
    %28 = vector.shape_cast %27 : vector<1x8x20xf32> to vector<8x20xf32>
    %cst_18 = arith.constant dense<0.000000e+00> : vector<8x20xf32>
    %29 = tpu.matmul %20, %0, %cst_18 {dimension_numbers = #tpu.dot_dimension_numbers<[1], [0], [0], [1], [0, 0, 1, 1], [], []>} : vector<8x20xf32>, vector<20x20xf32>, vector<8x20xf32> -> vector<8x20xf32>
    %30 = arith.addf %28, %29 : vector<8x20xf32>
    %31 = math.tanh %30 : vector<8x20xf32>
    %cst_19 = arith.constant dense<0.000000e+00> : vector<8x20xf32>
    %32 = tpu.matmul %31, %1, %cst_19 {dimension_numbers = #tpu.dot_dimension_numbers<[1], [0], [0], [1], [0, 0, 1, 1], [], []>} : vector<8x20xf32>, vector<20x20xf32>, vector<8x20xf32> -> vector<8x20xf32>
    %cst_20 = arith.constant dense<0.000000e+00> : vector<8x20xf32>
    %33 = tpu.matmul %26, %2, %cst_20 {dimension_numbers = #tpu.dot_dimension_numbers<[1], [0], [0], [1], [0, 0, 1, 1], [], []>} : vector<8x20xf32>, vector<20x20xf32>, vector<8x20xf32> -> vector<8x20xf32>
    %34 = arith.addf %32, %33 : vector<8x20xf32>
    %35 = vector.broadcast %3 : vector<1x20xf32> to vector<8x20xf32>
    %36 = arith.addf %34, %35 : vector<8x20xf32>
    %37 = math.tanh %36 : vector<8x20xf32>
    %38 = vector.extract_strided_slice %13 {offsets = [2, 0, 0], sizes = [1, 8, 20], strides = [1, 1, 1]} : vector<8x8x20xf32> to vector<1x8x20xf32>
    %39 = vector.shape_cast %38 : vector<1x8x20xf32> to vector<8x20xf32>
    %cst_21 = arith.constant dense<0.000000e+00> : vector<8x20xf32>
    %40 = tpu.matmul %31, %0, %cst_21 {dimension_numbers = #tpu.dot_dimension_numbers<[1], [0], [0], [1], [0, 0, 1, 1], [], []>} : vector<8x20xf32>, vector<20x20xf32>, vector<8x20xf32> -> vector<8x20xf32>
    %41 = arith.addf %39, %40 : vector<8x20xf32>
    %42 = math.tanh %41 : vector<8x20xf32>
    %cst_22 = arith.constant dense<0.000000e+00> : vector<8x20xf32>
    %43 = tpu.matmul %42, %1, %cst_22 {dimension_numbers = #tpu.dot_dimension_numbers<[1], [0], [0], [1], [0, 0, 1, 1], [], []>} : vector<8x20xf32>, vector<20x20xf32>, vector<8x20xf32> -> vector<8x20xf32>
    %cst_23 = arith.constant dense<0.000000e+00> : vector<8x20xf32>
    %44 = tpu.matmul %37, %2, %cst_23 {dimension_numbers = #tpu.dot_dimension_numbers<[1], [0], [0], [1], [0, 0, 1, 1], [], []>} : vector<8x20xf32>, vector<20x20xf32>, vector<8x20xf32> -> vector<8x20xf32>
    %45 = arith.addf %43, %44 : vector<8x20xf32>
    %46 = vector.broadcast %3 : vector<1x20xf32> to vector<8x20xf32>
    %47 = arith.addf %45, %46 : vector<8x20xf32>
    %48 = math.tanh %47 : vector<8x20xf32>
    %49 = vector.extract_strided_slice %13 {offsets = [3, 0, 0], sizes = [1, 8, 20], strides = [1, 1, 1]} : vector<8x8x20xf32> to vector<1x8x20xf32>
    %50 = vector.shape_cast %49 : vector<1x8x20xf32> to vector<8x20xf32>
    %cst_24 = arith.constant dense<0.000000e+00> : vector<8x20xf32>
    %51 = tpu.matmul %42, %0, %cst_24 {dimension_numbers = #tpu.dot_dimension_numbers<[1], [0], [0], [1], [0, 0, 1, 1], [], []>} : vector<8x20xf32>, vector<20x20xf32>, vector<8x20xf32> -> vector<8x20xf32>
    %52 = arith.addf %50, %51 : vector<8x20xf32>
    %53 = math.tanh %52 : vector<8x20xf32>
    %cst_25 = arith.constant dense<0.000000e+00> : vector<8x20xf32>
    %54 = tpu.matmul %53, %1, %cst_25 {dimension_numbers = #tpu.dot_dimension_numbers<[1], [0], [0], [1], [0, 0, 1, 1], [], []>} : vector<8x20xf32>, vector<20x20xf32>, vector<8x20xf32> -> vector<8x20xf32>
    %cst_26 = arith.constant dense<0.000000e+00> : vector<8x20xf32>
    %55 = tpu.matmul %48, %2, %cst_26 {dimension_numbers = #tpu.dot_dimension_numbers<[1], [0], [0], [1], [0, 0, 1, 1], [], []>} : vector<8x20xf32>, vector<20x20xf32>, vector<8x20xf32> -> vector<8x20xf32>
    %56 = arith.addf %54, %55 : vector<8x20xf32>
    %57 = vector.broadcast %3 : vector<1x20xf32> to vector<8x20xf32>
    %58 = arith.addf %56, %57 : vector<8x20xf32>
    %59 = math.tanh %58 : vector<8x20xf32>
    %60 = vector.extract_strided_slice %13 {offsets = [4, 0, 0], sizes = [1, 8, 20], strides = [1, 1, 1]} : vector<8x8x20xf32> to vector<1x8x20xf32>
    %61 = vector.shape_cast %60 : vector<1x8x20xf32> to vector<8x20xf32>
    %cst_27 = arith.constant dense<0.000000e+00> : vector<8x20xf32>
    %62 = tpu.matmul %53, %0, %cst_27 {dimension_numbers = #tpu.dot_dimension_numbers<[1], [0], [0], [1], [0, 0, 1, 1], [], []>} : vector<8x20xf32>, vector<20x20xf32>, vector<8x20xf32> -> vector<8x20xf32>
    %63 = arith.addf %61, %62 : vector<8x20xf32>
    %64 = math.tanh %63 : vector<8x20xf32>
    %cst_28 = arith.constant dense<0.000000e+00> : vector<8x20xf32>
    %65 = tpu.matmul %64, %1, %cst_28 {dimension_numbers = #tpu.dot_dimension_numbers<[1], [0], [0], [1], [0, 0, 1, 1], [], []>} : vector<8x20xf32>, vector<20x20xf32>, vector<8x20xf32> -> vector<8x20xf32>
    %cst_29 = arith.constant dense<0.000000e+00> : vector<8x20xf32>
    %66 = tpu.matmul %59, %2, %cst_29 {dimension_numbers = #tpu.dot_dimension_numbers<[1], [0], [0], [1], [0, 0, 1, 1], [], []>} : vector<8x20xf32>, vector<20x20xf32>, vector<8x20xf32> -> vector<8x20xf32>
    %67 = arith.addf %65, %66 : vector<8x20xf32>
    %68 = vector.broadcast %3 : vector<1x20xf32> to vector<8x20xf32>
    %69 = arith.addf %67, %68 : vector<8x20xf32>
    %70 = math.tanh %69 : vector<8x20xf32>
    %71 = vector.extract_strided_slice %13 {offsets = [5, 0, 0], sizes = [1, 8, 20], strides = [1, 1, 1]} : vector<8x8x20xf32> to vector<1x8x20xf32>
    %72 = vector.shape_cast %71 : vector<1x8x20xf32> to vector<8x20xf32>
    %cst_30 = arith.constant dense<0.000000e+00> : vector<8x20xf32>
    %73 = tpu.matmul %64, %0, %cst_30 {dimension_numbers = #tpu.dot_dimension_numbers<[1], [0], [0], [1], [0, 0, 1, 1], [], []>} : vector<8x20xf32>, vector<20x20xf32>, vector<8x20xf32> -> vector<8x20xf32>
    %74 = arith.addf %72, %73 : vector<8x20xf32>
    %75 = math.tanh %74 : vector<8x20xf32>
    %cst_31 = arith.constant dense<0.000000e+00> : vector<8x20xf32>
    %76 = tpu.matmul %75, %1, %cst_31 {dimension_numbers = #tpu.dot_dimension_numbers<[1], [0], [0], [1], [0, 0, 1, 1], [], []>} : vector<8x20xf32>, vector<20x20xf32>, vector<8x20xf32> -> vector<8x20xf32>
    %cst_32 = arith.constant dense<0.000000e+00> : vector<8x20xf32>
    %77 = tpu.matmul %70, %2, %cst_32 {dimension_numbers = #tpu.dot_dimension_numbers<[1], [0], [0], [1], [0, 0, 1, 1], [], []>} : vector<8x20xf32>, vector<20x20xf32>, vector<8x20xf32> -> vector<8x20xf32>
    %78 = arith.addf %76, %77 : vector<8x20xf32>
    %79 = vector.broadcast %3 : vector<1x20xf32> to vector<8x20xf32>
    %80 = arith.addf %78, %79 : vector<8x20xf32>
    %81 = math.tanh %80 : vector<8x20xf32>
    %82 = vector.extract_strided_slice %13 {offsets = [6, 0, 0], sizes = [1, 8, 20], strides = [1, 1, 1]} : vector<8x8x20xf32> to vector<1x8x20xf32>
    %83 = vector.shape_cast %82 : vector<1x8x20xf32> to vector<8x20xf32>
    %cst_33 = arith.constant dense<0.000000e+00> : vector<8x20xf32>
    %84 = tpu.matmul %75, %0, %cst_33 {dimension_numbers = #tpu.dot_dimension_numbers<[1], [0], [0], [1], [0, 0, 1, 1], [], []>} : vector<8x20xf32>, vector<20x20xf32>, vector<8x20xf32> -> vector<8x20xf32>
    %85 = arith.addf %83, %84 : vector<8x20xf32>
    %86 = math.tanh %85 : vector<8x20xf32>
    %cst_34 = arith.constant dense<0.000000e+00> : vector<8x20xf32>
    %87 = tpu.matmul %86, %1, %cst_34 {dimension_numbers = #tpu.dot_dimension_numbers<[1], [0], [0], [1], [0, 0, 1, 1], [], []>} : vector<8x20xf32>, vector<20x20xf32>, vector<8x20xf32> -> vector<8x20xf32>
    %cst_35 = arith.constant dense<0.000000e+00> : vector<8x20xf32>
    %88 = tpu.matmul %81, %2, %cst_35 {dimension_numbers = #tpu.dot_dimension_numbers<[1], [0], [0], [1], [0, 0, 1, 1], [], []>} : vector<8x20xf32>, vector<20x20xf32>, vector<8x20xf32> -> vector<8x20xf32>
    %89 = arith.addf %87, %88 : vector<8x20xf32>
    %90 = vector.broadcast %3 : vector<1x20xf32> to vector<8x20xf32>
    %91 = arith.addf %89, %90 : vector<8x20xf32>
    %92 = math.tanh %91 : vector<8x20xf32>
    %93 = vector.extract_strided_slice %13 {offsets = [7, 0, 0], sizes = [1, 8, 20], strides = [1, 1, 1]} : vector<8x8x20xf32> to vector<1x8x20xf32>
    %94 = vector.shape_cast %93 : vector<1x8x20xf32> to vector<8x20xf32>
    %cst_36 = arith.constant dense<0.000000e+00> : vector<8x20xf32>
    %95 = tpu.matmul %86, %0, %cst_36 {dimension_numbers = #tpu.dot_dimension_numbers<[1], [0], [0], [1], [0, 0, 1, 1], [], []>} : vector<8x20xf32>, vector<20x20xf32>, vector<8x20xf32> -> vector<8x20xf32>
    %96 = arith.addf %94, %95 : vector<8x20xf32>
    %97 = math.tanh %96 : vector<8x20xf32>
    %cst_37 = arith.constant dense<0.000000e+00> : vector<8x20xf32>
    %98 = tpu.matmul %97, %1, %cst_37 {dimension_numbers = #tpu.dot_dimension_numbers<[1], [0], [0], [1], [0, 0, 1, 1], [], []>} : vector<8x20xf32>, vector<20x20xf32>, vector<8x20xf32> -> vector<8x20xf32>
    %cst_38 = arith.constant dense<0.000000e+00> : vector<8x20xf32>
    %99 = tpu.matmul %92, %2, %cst_38 {dimension_numbers = #tpu.dot_dimension_numbers<[1], [0], [0], [1], [0, 0, 1, 1], [], []>} : vector<8x20xf32>, vector<20x20xf32>, vector<8x20xf32> -> vector<8x20xf32>
    %100 = arith.addf %98, %99 : vector<8x20xf32>
    %101 = vector.broadcast %3 : vector<1x20xf32> to vector<8x20xf32>
    %102 = arith.addf %100, %101 : vector<8x20xf32>
    %103 = math.tanh %102 : vector<8x20xf32>
    %c0_39 = arith.constant 0 : index
    %c0_40 = arith.constant 0 : index
    %104 = vector.load %arg7[%c0_39, %c0_40] : memref<1x20xf32, #tpu.memory_space<vmem>>, vector<1x20xf32>
    %105 = vector.broadcast %104 : vector<1x20xf32> to vector<8x20xf32>
    %106 = arith.mulf %103, %105 : vector<8x20xf32>
    %cst_41 = arith.constant dense<0.000000e+00> : vector<8xf32>
    %107 = vector.multi_reduction <add>, %106, %cst_41 [1] : vector<8x20xf32> to vector<8xf32>
    %108 = vector.shape_cast %107 : vector<8xf32> to vector<8x1xf32>
    %c0_42 = arith.constant 0 : index
    %c0_43 = arith.constant 0 : index
    %109 = vector.load %arg8[%c0_42, %c0_43] : memref<1x1xf32, #tpu.memory_space<vmem>>, vector<1x1xf32>
    %110 = vector.broadcast %109 : vector<1x1xf32> to vector<8x1xf32>
    %111 = arith.addf %108, %110 : vector<8x1xf32>
    %c0_44 = arith.constant 0 : index
    %c0_45 = arith.constant 0 : index
    %112 = vector.load %arg9[%c0_44, %c0_45] : memref<8x1xf32, #tpu.memory_space<vmem>>, vector<8x1xf32>
    tpu.vector_store %arg9[%c0_44, %c0_45], %111 {strides = array<i32>} : memref<8x1xf32, #tpu.memory_space<vmem>>, vector<8x1xf32>,
    return
  }
}

</mosaic_0001>

<llo_original>
// kernel: simple_rnn_forward.1
$region0: #{simple_rnn_forward.1}
  #allocation0 [shape = 'u32[]', space=smem, size = 0x4, offset = 0x4, fixed_abs, tag = 'smem constant byte address 0x4 - core index']
  #allocation1 [shape = 'u32[144,128]{1,0:T(1,128)}', space=vmem, size = 0x12000, scoped, tag = 'internal scratch']
  #allocation2 [shape = 'f32[1,1]{1,0:T(1,128)S(1)}', space=vmem, size = 0x200, scoped, tag = 'scoped memory for simple_rnn_forward.1']
  %s0 = inlined_call_operand.vmem [shape: f32[8,8,1], index: 0, kind: input, shape index: {}]
  %s1 = inlined_call_operand.vmem [shape: f32[1,20], index: 1, kind: input, shape index: {}]
  %s2 = inlined_call_operand.vmem [shape: f32[20,20], index: 2, kind: input, shape index: {}]
  %s3 = inlined_call_operand.vmem [shape: f32[1,20], index: 3, kind: input, shape index: {}]
  %s4 = inlined_call_operand.vmem [shape: f32[20,20], index: 4, kind: input, shape index: {}]
  %s5 = inlined_call_operand.vmem [shape: f32[20,20], index: 5, kind: input, shape index: {}]
  %s6 = inlined_call_operand.vmem [shape: f32[1,20], index: 6, kind: input, shape index: {}]
  %s7 = inlined_call_operand.vmem [shape: f32[1,20], index: 7, kind: input, shape index: {}]
  %s8 = inlined_call_operand.<no memory space> [shape: f32[1,1], index: 8, kind: input, shape index: {}]
  %s9 = inlined_call_operand.vmem [shape: f32[8,1], index: 9, kind: output, shape index: {}]
  %s10 = sld [smem:[#allocation0]]
  $region46: #{simple_rnn_forward.1} parent=0
    _
  %s12 = ssub.s32 1, %s10
  %s13 = scalar_select 0, %s12, %s10
  %v14 = vstv %s8
  %15 = vst [vmem:[#allocation2] sm:$0x1] %v14
  // Predicated region
  $region2: #{simple_rnn_forward.1} parent=0 // pred_check
    _
  $region3: #{simple_rnn_forward.1} parent=0 // pred_check_branch
    %17 = sbr.rel (0) target = $region5
  $region4: #{simple_rnn_forward.1} parent=0 // pred_region
    _
  $region5: #{simple_rnn_forward.1} parent=0 // pred_fallthru
    _
  // Predicated region
  $region6: #{simple_rnn_forward.1} parent=0 // pred_check
    _
  $region7: #{simple_rnn_forward.1} parent=0 // pred_check_branch
    %19 = sbr.rel (0) target = $region9
  $region8: #{simple_rnn_forward.1} parent=0 // pred_region
    _
  $region9: #{simple_rnn_forward.1} parent=0 // pred_fallthru
    _
  // Predicated region
  $region10: #{simple_rnn_forward.1} parent=0 // pred_check
    _
  $region11: #{simple_rnn_forward.1} parent=0 // pred_check_branch
    %21 = sbr.rel (0) target = $region13
  $region12: #{simple_rnn_forward.1} parent=0 // pred_region
    _
  $region13: #{simple_rnn_forward.1} parent=0 // pred_fallthru
    _
  // Predicated region
  $region14: #{simple_rnn_forward.1} parent=0 // pred_check
    _
  $region15: #{simple_rnn_forward.1} parent=0 // pred_check_branch
    %23 = sbr.rel (0) target = $region17
  $region16: #{simple_rnn_forward.1} parent=0 // pred_region
    _
  $region17: #{simple_rnn_forward.1} parent=0 // pred_fallthru
    _
  // Predicated region
  $region18: #{simple_rnn_forward.1} parent=0 // pred_check
    _
  $region19: #{simple_rnn_forward.1} parent=0 // pred_check_branch
    %25 = sbr.rel (0) target = $region21
  $region20: #{simple_rnn_forward.1} parent=0 // pred_region
    _
  $region21: #{simple_rnn_forward.1} parent=0 // pred_fallthru
    _
  // Predicated region
  $region22: #{simple_rnn_forward.1} parent=0 // pred_check
    _
  $region23: #{simple_rnn_forward.1} parent=0 // pred_check_branch
    %27 = sbr.rel (0) target = $region25
  $region24: #{simple_rnn_forward.1} parent=0 // pred_region
    _
  $region25: #{simple_rnn_forward.1} parent=0 // pred_fallthru
    _
  // Predicated region
  $region26: #{simple_rnn_forward.1} parent=0 // pred_check
    _
  $region27: #{simple_rnn_forward.1} parent=0 // pred_check_branch
    %29 = sbr.rel (0) target = $region29
  $region28: #{simple_rnn_forward.1} parent=0 // pred_region
    _
  $region29: #{simple_rnn_forward.1} parent=0 // pred_fallthru
    _
  // Predicated region
  $region30: #{simple_rnn_forward.1} parent=0 // pred_check
    _
  $region31: #{simple_rnn_forward.1} parent=0 // pred_check_branch
    %31 = sbr.rel (0) target = $region33
  $region32: #{simple_rnn_forward.1} parent=0 // pred_region
    _
  $region33: #{simple_rnn_forward.1} parent=0 // pred_fallthru
    _
  // Predicated region
  $region34: #{simple_rnn_forward.1} parent=0 // pred_check
    _
  $region35: #{simple_rnn_forward.1} parent=0 // pred_check_branch
    %33 = sbr.rel (0) target = $region37
  $region36: #{simple_rnn_forward.1} parent=0 // pred_region
    _
  $region37: #{simple_rnn_forward.1} parent=0 // pred_fallthru
    _
  %v34 = vld [vmem:[%s2] sm:$0xff]
  %v35 = vld [vmem:[%s2 + $0x8] sm:$0xff]
  %v36 = vld [vmem:[%s2 + $0x10] sm:$0xf]
  %v37 = vld [vmem:[%s4] sm:$0xff]
  %v38 = vld [vmem:[%s4 + $0x8] sm:$0xff]
  %v39 = vld [vmem:[%s4 + $0x10] sm:$0xf]
  %v40 = vld [vmem:[%s5] sm:$0xff]
  %v41 = vld [vmem:[%s5 + $0x8] sm:$0xff]
  %v42 = vld [vmem:[%s5 + $0x10] sm:$0xf]
  %v43 = vld [vmem:[%s6] sm:$0x1]
  %v44 = vld [vmem:[%s0] sm:$0xff]
  %v45 = vld [vmem:[%s0 + $0x8] sm:$0xff]
  %v46 = vld [vmem:[%s0 + $0x10] sm:$0xff]
  %v47 = vld [vmem:[%s0 + $0x18] sm:$0xff]
  %v48 = vld [vmem:[%s0 + $0x20] sm:$0xff]
  %v49 = vld [vmem:[%s0 + $0x28] sm:$0xff]
  %v50 = vld [vmem:[%s0 + $0x30] sm:$0xff]
  %v51 = vld [vmem:[%s0 + $0x38] sm:$0xff]
  %v52 = vld [vmem:[%s1] sm:$0x1]
  %54 = vset.pattern.permute.xlu0 0
  %55 = vperm.xlu0 %54, %v44
  %v56 = vpop.permute.xlu0 %55
  %59 = vset.pattern.permute.xlu0 0
  %60 = vperm.xlu0 %59, %v45
  %v61 = vpop.permute.xlu0 %60
  %64 = vset.pattern.permute.xlu0 0
  %65 = vperm.xlu0 %64, %v46
  %v66 = vpop.permute.xlu0 %65
  %69 = vset.pattern.permute.xlu0 0
  %70 = vperm.xlu0 %69, %v47
  %v71 = vpop.permute.xlu0 %70
  %74 = vset.pattern.permute.xlu0 0
  %75 = vperm.xlu0 %74, %v48
  %v76 = vpop.permute.xlu0 %75
  %79 = vset.pattern.permute.xlu0 0
  %80 = vperm.xlu0 %79, %v49
  %v81 = vpop.permute.xlu0 %80
  %84 = vset.pattern.permute.xlu0 0
  %85 = vperm.xlu0 %84, %v50
  %v86 = vpop.permute.xlu0 %85
  %89 = vset.pattern.permute.xlu0 0
  %90 = vperm.xlu0 %89, %v51
  %v91 = vpop.permute.xlu0 %90
  %v94 = vlaneseq
  %v95 = vshrl.u32 %v94, 7
  %v96 = vsub.s32 0, %v95
  %v97 = vrot.slane %v52, %v96
  %v99 = vmul.f32 %v56, %v97
  %v100 = vmul.f32 %v61, %v97
  %v101 = vmul.f32 %v66, %v97
  %v102 = vmul.f32 %v71, %v97
  %v103 = vmul.f32 %v76, %v97
  %v104 = vmul.f32 %v81, %v97
  %v105 = vmul.f32 %v86, %v97
  %v106 = vmul.f32 %v91, %v97
  %v107 = vld [vmem:[%s3] sm:$0x1]
  %v109 = vlaneseq
  %v110 = vshrl.u32 %v109, 7
  %v111 = vsub.s32 0, %v110
  %v112 = vrot.slane %v107, %v111
  %v114 = vadd.f32 %v99, %v112
  %v115 = vadd.f32 %v100, %v112
  %v116 = vadd.f32 %v101, %v112
  %v117 = vadd.f32 %v102, %v112
  %v118 = vadd.f32 %v103, %v112
  %v119 = vadd.f32 %v104, %v112
  %v120 = vadd.f32 %v105, %v112
  %v121 = vadd.f32 %v106, %v112
  %vm122 = vcmask 162816
  %v124 = vsel %vm122, 0.0, 0
  %vm126 = vcmask 1043456
  %v128 = vsel %vm126, %v36, 0
  %130 = vmatprep.subr.mxu0 0.0
  %131 = vmatpush1.msra.mxu0 %v34
  %132 = vmatprep.subr.mxu0 0.0
  %133 = vmatpush1.msra.mxu0 %v35
  %134 = vmatprep.subr.mxu0 0.0
  %135 = vmatpush1.msra.mxu0 %v128
  %136 = vmatprep.subr.mxu0 0.0
  %137 = vmatpush1.msra.mxu0 0.0
  %138 = vmatprep.subr.mxu0 0.0
  %139 = vmatpush1.msra.mxu0 0.0
  %140 = vmatprep.subr.mxu0 0.0
  %141 = vmatpush1.msra.mxu0 0.0
  %142 = vmatprep.subr.mxu0 0.0
  %143 = vmatpush1.msra.mxu0 0.0
  %144 = vmatprep.subr.mxu0 0.0
  %145 = vmatpush1.msra.mxu0 0.0
  %146 = vmatprep.subr.mxu0 0.0
  %147 = vmatpush1.msra.mxu0 0.0
  %148 = vmatprep.subr.mxu0 0.0
  %149 = vmatpush1.msra.mxu0 0.0
  %150 = vmatprep.subr.mxu0 0.0
  %151 = vmatpush1.msra.mxu0 0.0
  %152 = vmatprep.subr.mxu0 0.0
  %153 = vmatpush1.msra.mxu0 0.0
  %154 = vmatprep.subr.mxu0 0.0
  %155 = vmatpush1.msra.mxu0 0.0
  %156 = vmatprep.subr.mxu0 0.0
  %157 = vmatpush1.msra.mxu0 0.0
  %158 = vmatprep.subr.mxu0 0.0
  %159 = vmatpush1.msra.mxu0 0.0
  %160 = vmatprep.subr.mxu0 0.0
  %161 = vmatpush1.msra.mxu0 0.0
  %162 = vmatprep.subr.mxu0 0.0
  %163 = vmatpush1.msra.mxu0 0.0
  %164 = vmatprep.subr.mxu0 0.0
  %165 = vmatpush1.msra.mxu0 0.0
  %166 = vmatprep.subr.mxu0 0.0
  %167 = vmatpush1.msra.mxu0 0.0
  %168 = vmatprep.subr.mxu0 0.0
  %169 = vmatpush1.msra.mxu0 0.0
  %170 = vmatprep.subr.mxu0 0.0
  %171 = vmatpush1.msra.mxu0 0.0
  %172 = vmatprep.subr.mxu0 0.0
  %173 = vmatpush1.msra.mxu0 0.0
  %174 = vmatprep.subr.mxu0 0.0
  %175 = vmatpush1.msra.mxu0 0.0
  %176 = vmatprep.subr.mxu0 0.0
  %177 = vmatpush1.msra.mxu0 0.0
  %178 = vmatprep.subr.mxu0 0.0
  %179 = vmatpush1.msra.mxu0 0.0
  %180 = vmatprep.subr.mxu0 0.0
  %181 = vmatpush1.msra.mxu0 0.0
  %182 = vmatprep.subr.mxu0 0.0
  %183 = vmatpush1.msra.mxu0 0.0
  %184 = vmatprep.subr.mxu0 0.0
  %185 = vmatpush1.msra.mxu0 0.0
  %186 = vmatprep.subr.mxu0 0.0
  %187 = vmatpush1.msra.mxu0 0.0
  %188 = vmatprep.subr.mxu0 0.0
  %189 = vmatpush1.msra.mxu0 0.0
  %190 = vmatprep.subr.mxu0 0.0
  %191 = vmatpush1.msra.mxu0 0.0
  %192 = vmatprep.subr.mxu0 0.0
  %193 = vmatpush1.msra.mxu0 0.0
  %194 = vmatprep.mubr.f32.mxu0 0.0
  %195 = vmatmul.mubr.f32.gmra.mrb[0].mxu0 %v124
  %v196 = vpop.f32.mrb[0].mxu0
  %v197 = vadd.f32 0.0, %v196
  %v198 = vpop.f32.mrb[0].mxu0
  %199 = vdwg.mxu0
  %v200 = vadd.f32 %v114, %v197
  %v201 = vtanh.pop %v200
  %v203 = vsel %vm126, %v42, 0
  %205 = vmatprep.subr.mxu0 0.0
  %206 = vmatpush1.msra.mxu0 %v40
  %207 = vmatprep.subr.mxu0 0.0
  %208 = vmatpush1.msra.mxu0 %v41
  %209 = vmatprep.subr.mxu0 0.0
  %210 = vmatpush1.msra.mxu0 %v203
  %211 = vmatprep.subr.mxu0 0.0
  %212 = vmatpush1.msra.mxu0 0.0
  %213 = vmatprep.subr.mxu0 0.0
  %214 = vmatpush1.msra.mxu0 0.0
  %215 = vmatprep.subr.mxu0 0.0
  %216 = vmatpush1.msra.mxu0 0.0
  %217 = vmatprep.subr.mxu0 0.0
  %218 = vmatpush1.msra.mxu0 0.0
  %219 = vmatprep.subr.mxu0 0.0
  %220 = vmatpush1.msra.mxu0 0.0
  %221 = vmatprep.subr.mxu0 0.0
  %222 = vmatpush1.msra.mxu0 0.0
  %223 = vmatprep.subr.mxu0 0.0
  %224 = vmatpush1.msra.mxu0 0.0
  %225 = vmatprep.subr.mxu0 0.0
  %226 = vmatpush1.msra.mxu0 0.0
  %227 = vmatprep.subr.mxu0 0.0
  %228 = vmatpush1.msra.mxu0 0.0
  %229 = vmatprep.subr.mxu0 0.0
  %230 = vmatpush1.msra.mxu0 0.0
  %231 = vmatprep.subr.mxu0 0.0
  %232 = vmatpush1.msra.mxu0 0.0
  %233 = vmatprep.subr.mxu0 0.0
  %234 = vmatpush1.msra.mxu0 0.0
  %235 = vmatprep.subr.mxu0 0.0
  %236 = vmatpush1.msra.mxu0 0.0
  %237 = vmatprep.subr.mxu0 0.0
  %238 = vmatpush1.msra.mxu0 0.0
  %239 = vmatprep.subr.mxu0 0.0
  %240 = vmatpush1.msra.mxu0 0.0
  %241 = vmatprep.subr.mxu0 0.0
  %242 = vmatpush1.msra.mxu0 0.0
  %243 = vmatprep.subr.mxu0 0.0
  %244 = vmatpush1.msra.mxu0 0.0
  %245 = vmatprep.subr.mxu0 0.0
  %246 = vmatpush1.msra.mxu0 0.0
  %247 = vmatprep.subr.mxu0 0.0
  %248 = vmatpush1.msra.mxu0 0.0
  %249 = vmatprep.subr.mxu0 0.0
  %250 = vmatpush1.msra.mxu0 0.0
  %251 = vmatprep.subr.mxu0 0.0
  %252 = vmatpush1.msra.mxu0 0.0
  %253 = vmatprep.subr.mxu0 0.0
  %254 = vmatpush1.msra.mxu0 0.0
  %255 = vmatprep.subr.mxu0 0.0
  %256 = vmatpush1.msra.mxu0 0.0
  %257 = vmatprep.subr.mxu0 0.0
  %258 = vmatpush1.msra.mxu0 0.0
  %259 = vmatprep.subr.mxu0 0.0
  %260 = vmatpush1.msra.mxu0 0.0
  %261 = vmatprep.subr.mxu0 0.0
  %262 = vmatpush1.msra.mxu0 0.0
  %263 = vmatprep.subr.mxu0 0.0
  %264 = vmatpush1.msra.mxu0 0.0
  %265 = vmatprep.subr.mxu0 0.0
  %266 = vmatpush1.msra.mxu0 0.0
  %267 = vmatprep.subr.mxu0 0.0
  %268 = vmatpush1.msra.mxu0 0.0
  %269 = vmatprep.mubr.f32.mxu0 0.0
  %270 = vmatmul.mubr.f32.gmra.mrb[0].mxu0 %v124
  %v271 = vpop.f32.mrb[0].mxu0
  %v272 = vadd.f32 0.0, %v271
  %v273 = vpop.f32.mrb[0].mxu0
  %274 = vdwg.mxu0
  %v276 = vsel %vm122, %v201, 0
  %v279 = vsel %vm126, %v39, 0
  %281 = vmatprep.subr.mxu0 0.0
  %282 = vmatpush1.msra.mxu0 %v37
  %283 = vmatprep.subr.mxu0 0.0
  %284 = vmatpush1.msra.mxu0 %v38
  %285 = vmatprep.subr.mxu0 0.0
  %286 = vmatpush1.msra.mxu0 %v279
  %287 = vmatprep.subr.mxu0 0.0
  %288 = vmatpush1.msra.mxu0 0.0
  %289 = vmatprep.subr.mxu0 0.0
  %290 = vmatpush1.msra.mxu0 0.0
  %291 = vmatprep.subr.mxu0 0.0
  %292 = vmatpush1.msra.mxu0 0.0
  %293 = vmatprep.subr.mxu0 0.0
  %294 = vmatpush1.msra.mxu0 0.0
  %295 = vmatprep.subr.mxu0 0.0
  %296 = vmatpush1.msra.mxu0 0.0
  %297 = vmatprep.subr.mxu0 0.0
  %298 = vmatpush1.msra.mxu0 0.0
  %299 = vmatprep.subr.mxu0 0.0
  %300 = vmatpush1.msra.mxu0 0.0
  %301 = vmatprep.subr.mxu0 0.0
  %302 = vmatpush1.msra.mxu0 0.0
  %303 = vmatprep.subr.mxu0 0.0
  %304 = vmatpush1.msra.mxu0 0.0
  %305 = vmatprep.subr.mxu0 0.0
  %306 = vmatpush1.msra.mxu0 0.0
  %307 = vmatprep.subr.mxu0 0.0
  %308 = vmatpush1.msra.mxu0 0.0
  %309 = vmatprep.subr.mxu0 0.0
  %310 = vmatpush1.msra.mxu0 0.0
  %311 = vmatprep.subr.mxu0 0.0
  %312 = vmatpush1.msra.mxu0 0.0
  %313 = vmatprep.subr.mxu0 0.0
  %314 = vmatpush1.msra.mxu0 0.0
  %315 = vmatprep.subr.mxu0 0.0
  %316 = vmatpush1.msra.mxu0 0.0
  %317 = vmatprep.subr.mxu0 0.0
  %318 = vmatpush1.msra.mxu0 0.0
  %319 = vmatprep.subr.mxu0 0.0
  %320 = vmatpush1.msra.mxu0 0.0
  %321 = vmatprep.subr.mxu0 0.0
  %322 = vmatpush1.msra.mxu0 0.0
  %323 = vmatprep.subr.mxu0 0.0
  %324 = vmatpush1.msra.mxu0 0.0
  %325 = vmatprep.subr.mxu0 0.0
  %326 = vmatpush1.msra.mxu0 0.0
  %327 = vmatprep.subr.mxu0 0.0
  %328 = vmatpush1.msra.mxu0 0.0
  %329 = vmatprep.subr.mxu0 0.0
  %330 = vmatpush1.msra.mxu0 0.0
  %331 = vmatprep.subr.mxu0 0.0
  %332 = vmatpush1.msra.mxu0 0.0
  %333 = vmatprep.subr.mxu0 0.0
  %334 = vmatpush1.msra.mxu0 0.0
  %335 = vmatprep.subr.mxu0 0.0
  %336 = vmatpush1.msra.mxu0 0.0
  %337 = vmatprep.subr.mxu0 0.0
  %338 = vmatpush1.msra.mxu0 0.0
  %339 = vmatprep.subr.mxu0 0.0
  %340 = vmatpush1.msra.mxu0 0.0
  %341 = vmatprep.subr.mxu0 0.0
  %342 = vmatpush1.msra.mxu0 0.0
  %343 = vmatprep.subr.mxu0 0.0
  %344 = vmatpush1.msra.mxu0 0.0
  %345 = vmatprep.mubr.f32.mxu0 0.0
  %346 = vmatmul.mubr.f32.gmra.mrb[0].mxu0 %v276
  %v347 = vpop.f32.mrb[0].mxu0
  %v348 = vadd.f32 %v272, %v347
  %v349 = vpop.f32.mrb[0].mxu0
  %350 = vdwg.mxu0
  %v352 = vlaneseq
  %v353 = vshrl.u32 %v352, 7
  %v354 = vsub.s32 0, %v353
  %v355 = vrot.slane %v43, %v354
  %v357 = vadd.f32 %v348, %v355
  %v358 = vtanh.pop %v357
  %359 = vmatprep.subr.mxu0 0.0
  %360 = vmatpush1.msra.mxu0 %v34
  %361 = vmatprep.subr.mxu0 0.0
  %362 = vmatpush1.msra.mxu0 %v35
  %363 = vmatprep.subr.mxu0 0.0
  %364 = vmatpush1.msra.mxu0 %v128
  %365 = vmatprep.subr.mxu0 0.0
  %366 = vmatpush1.msra.mxu0 0.0
  %367 = vmatprep.subr.mxu0 0.0
  %368 = vmatpush1.msra.mxu0 0.0
  %369 = vmatprep.subr.mxu0 0.0
  %370 = vmatpush1.msra.mxu0 0.0
  %371 = vmatprep.subr.mxu0 0.0
  %372 = vmatpush1.msra.mxu0 0.0
  %373 = vmatprep.subr.mxu0 0.0
  %374 = vmatpush1.msra.mxu0 0.0
  %375 = vmatprep.subr.mxu0 0.0
  %376 = vmatpush1.msra.mxu0 0.0
  %377 = vmatprep.subr.mxu0 0.0
  %378 = vmatpush1.msra.mxu0 0.0
  %379 = vmatprep.subr.mxu0 0.0
  %380 = vmatpush1.msra.mxu0 0.0
  %381 = vmatprep.subr.mxu0 0.0
  %382 = vmatpush1.msra.mxu0 0.0
  %383 = vmatprep.subr.mxu0 0.0
  %384 = vmatpush1.msra.mxu0 0.0
  %385 = vmatprep.subr.mxu0 0.0
  %386 = vmatpush1.msra.mxu0 0.0
  %387 = vmatprep.subr.mxu0 0.0
  %388 = vmatpush1.msra.mxu0 0.0
  %389 = vmatprep.subr.mxu0 0.0
  %390 = vmatpush1.msra.mxu0 0.0
  %391 = vmatprep.subr.mxu0 0.0
  %392 = vmatpush1.msra.mxu0 0.0
  %393 = vmatprep.subr.mxu0 0.0
  %394 = vmatpush1.msra.mxu0 0.0
  %395 = vmatprep.subr.mxu0 0.0
  %396 = vmatpush1.msra.mxu0 0.0
  %397 = vmatprep.subr.mxu0 0.0
  %398 = vmatpush1.msra.mxu0 0.0
  %399 = vmatprep.subr.mxu0 0.0
  %400 = vmatpush1.msra.mxu0 0.0
  %401 = vmatprep.subr.mxu0 0.0
  %402 = vmatpush1.msra.mxu0 0.0
  %403 = vmatprep.subr.mxu0 0.0
  %404 = vmatpush1.msra.mxu0 0.0
  %405 = vmatprep.subr.mxu0 0.0
  %406 = vmatpush1.msra.mxu0 0.0
  %407 = vmatprep.subr.mxu0 0.0
  %408 = vmatpush1.msra.mxu0 0.0
  %409 = vmatprep.subr.mxu0 0.0
  %410 = vmatpush1.msra.mxu0 0.0
  %411 = vmatprep.subr.mxu0 0.0
  %412 = vmatpush1.msra.mxu0 0.0
  %413 = vmatprep.subr.mxu0 0.0
  %414 = vmatpush1.msra.mxu0 0.0
  %415 = vmatprep.subr.mxu0 0.0
  %416 = vmatpush1.msra.mxu0 0.0
  %417 = vmatprep.subr.mxu0 0.0
  %418 = vmatpush1.msra.mxu0 0.0
  %419 = vmatprep.subr.mxu0 0.0
  %420 = vmatpush1.msra.mxu0 0.0
  %421 = vmatprep.subr.mxu0 0.0
  %422 = vmatpush1.msra.mxu0 0.0
  %423 = vmatprep.mubr.f32.mxu0 0.0
  %424 = vmatmul.mubr.f32.gmra.mrb[0].mxu0 %v276
  %v425 = vpop.f32.mrb[0].mxu0
  %v426 = vadd.f32 0.0, %v425
  %v427 = vpop.f32.mrb[0].mxu0
  %428 = vdwg.mxu0
  %v429 = vadd.f32 %v115, %v426
  %v430 = vtanh.pop %v429
  %v432 = vsel %vm122, %v358, 0
  %434 = vmatprep.subr.mxu0 0.0
  %435 = vmatpush1.msra.mxu0 %v40
  %436 = vmatprep.subr.mxu0 0.0
  %437 = vmatpush1.msra.mxu0 %v41
  %438 = vmatprep.subr.mxu0 0.0
  %439 = vmatpush1.msra.mxu0 %v203
  %440 = vmatprep.subr.mxu0 0.0
  %441 = vmatpush1.msra.mxu0 0.0
  %442 = vmatprep.subr.mxu0 0.0
  %443 = vmatpush1.msra.mxu0 0.0
  %444 = vmatprep.subr.mxu0 0.0
  %445 = vmatpush1.msra.mxu0 0.0
  %446 = vmatprep.subr.mxu0 0.0
  %447 = vmatpush1.msra.mxu0 0.0
  %448 = vmatprep.subr.mxu0 0.0
  %449 = vmatpush1.msra.mxu0 0.0
  %450 = vmatprep.subr.mxu0 0.0
  %451 = vmatpush1.msra.mxu0 0.0
  %452 = vmatprep.subr.mxu0 0.0
  %453 = vmatpush1.msra.mxu0 0.0
  %454 = vmatprep.subr.mxu0 0.0
  %455 = vmatpush1.msra.mxu0 0.0
  %456 = vmatprep.subr.mxu0 0.0
  %457 = vmatpush1.msra.mxu0 0.0
  %458 = vmatprep.subr.mxu0 0.0
  %459 = vmatpush1.msra.mxu0 0.0
  %460 = vmatprep.subr.mxu0 0.0
  %461 = vmatpush1.msra.mxu0 0.0
  %462 = vmatprep.subr.mxu0 0.0
  %463 = vmatpush1.msra.mxu0 0.0
  %464 = vmatprep.subr.mxu0 0.0
  %465 = vmatpush1.msra.mxu0 0.0
  %466 = vmatprep.subr.mxu0 0.0
  %467 = vmatpush1.msra.mxu0 0.0
  %468 = vmatprep.subr.mxu0 0.0
  %469 = vmatpush1.msra.mxu0 0.0
  %470 = vmatprep.subr.mxu0 0.0
  %471 = vmatpush1.msra.mxu0 0.0
  %472 = vmatprep.subr.mxu0 0.0
  %473 = vmatpush1.msra.mxu0 0.0
  %474 = vmatprep.subr.mxu0 0.0
  %475 = vmatpush1.msra.mxu0 0.0
  %476 = vmatprep.subr.mxu0 0.0
  %477 = vmatpush1.msra.mxu0 0.0
  %478 = vmatprep.subr.mxu0 0.0
  %479 = vmatpush1.msra.mxu0 0.0
  %480 = vmatprep.subr.mxu0 0.0
  %481 = vmatpush1.msra.mxu0 0.0
  %482 = vmatprep.subr.mxu0 0.0
  %483 = vmatpush1.msra.mxu0 0.0
  %484 = vmatprep.subr.mxu0 0.0
  %485 = vmatpush1.msra.mxu0 0.0
  %486 = vmatprep.subr.mxu0 0.0
  %487 = vmatpush1.msra.mxu0 0.0
  %488 = vmatprep.subr.mxu0 0.0
  %489 = vmatpush1.msra.mxu0 0.0
  %490 = vmatprep.subr.mxu0 0.0
  %491 = vmatpush1.msra.mxu0 0.0
  %492 = vmatprep.subr.mxu0 0.0
  %493 = vmatpush1.msra.mxu0 0.0
  %494 = vmatprep.subr.mxu0 0.0
  %495 = vmatpush1.msra.mxu0 0.0
  %496 = vmatprep.subr.mxu0 0.0
  %497 = vmatpush1.msra.mxu0 0.0
  %498 = vmatprep.mubr.f32.mxu0 0.0
  %499 = vmatmul.mubr.f32.gmra.mrb[0].mxu0 %v432
  %v500 = vpop.f32.mrb[0].mxu0
  %v501 = vadd.f32 0.0, %v500
  %v502 = vpop.f32.mrb[0].mxu0
  %503 = vdwg.mxu0
  %v505 = vsel %vm122, %v430, 0
  %507 = vmatprep.subr.mxu0 0.0
  %508 = vmatpush1.msra.mxu0 %v37
  %509 = vmatprep.subr.mxu0 0.0
  %510 = vmatpush1.msra.mxu0 %v38
  %511 = vmatprep.subr.mxu0 0.0
  %512 = vmatpush1.msra.mxu0 %v279
  %513 = vmatprep.subr.mxu0 0.0
  %514 = vmatpush1.msra.mxu0 0.0
  %515 = vmatprep.subr.mxu0 0.0
  %516 = vmatpush1.msra.mxu0 0.0
  %517 = vmatprep.subr.mxu0 0.0
  %518 = vmatpush1.msra.mxu0 0.0
  %519 = vmatprep.subr.mxu0 0.0
  %520 = vmatpush1.msra.mxu0 0.0
  %521 = vmatprep.subr.mxu0 0.0
  %522 = vmatpush1.msra.mxu0 0.0
  %523 = vmatprep.subr.mxu0 0.0
  %524 = vmatpush1.msra.mxu0 0.0
  %525 = vmatprep.subr.mxu0 0.0
  %526 = vmatpush1.msra.mxu0 0.0
  %527 = vmatprep.subr.mxu0 0.0
  %528 = vmatpush1.msra.mxu0 0.0
  %529 = vmatprep.subr.mxu0 0.0
  %530 = vmatpush1.msra.mxu0 0.0
  %531 = vmatprep.subr.mxu0 0.0
  %532 = vmatpush1.msra.mxu0 0.0
  %533 = vmatprep.subr.mxu0 0.0
  %534 = vmatpush1.msra.mxu0 0.0
  %535 = vmatprep.subr.mxu0 0.0
  %536 = vmatpush1.msra.mxu0 0.0
  %537 = vmatprep.subr.mxu0 0.0
  %538 = vmatpush1.msra.mxu0 0.0
  %539 = vmatprep.subr.mxu0 0.0
  %540 = vmatpush1.msra.mxu0 0.0
  %541 = vmatprep.subr.mxu0 0.0
  %542 = vmatpush1.msra.mxu0 0.0
  %543 = vmatprep.subr.mxu0 0.0
  %544 = vmatpush1.msra.mxu0 0.0
  %545 = vmatprep.subr.mxu0 0.0
  %546 = vmatpush1.msra.mxu0 0.0
  %547 = vmatprep.subr.mxu0 0.0
  %548 = vmatpush1.msra.mxu0 0.0
  %549 = vmatprep.subr.mxu0 0.0
  %550 = vmatpush1.msra.mxu0 0.0
  %551 = vmatprep.subr.mxu0 0.0
  %552 = vmatpush1.msra.mxu0 0.0
  %553 = vmatprep.subr.mxu0 0.0
  %554 = vmatpush1.msra.mxu0 0.0
  %555 = vmatprep.subr.mxu0 0.0
  %556 = vmatpush1.msra.mxu0 0.0
  %557 = vmatprep.subr.mxu0 0.0
  %558 = vmatpush1.msra.mxu0 0.0
  %559 = vmatprep.subr.mxu0 0.0
  %560 = vmatpush1.msra.mxu0 0.0
  %561 = vmatprep.subr.mxu0 0.0
  %562 = vmatpush1.msra.mxu0 0.0
  %563 = vmatprep.subr.mxu0 0.0
  %564 = vmatpush1.msra.mxu0 0.0
  %565 = vmatprep.subr.mxu0 0.0
  %566 = vmatpush1.msra.mxu0 0.0
  %567 = vmatprep.subr.mxu0 0.0
  %568 = vmatpush1.msra.mxu0 0.0
  %569 = vmatprep.subr.mxu0 0.0
  %570 = vmatpush1.msra.mxu0 0.0
  %571 = vmatprep.mubr.f32.mxu0 0.0
  %572 = vmatmul.mubr.f32.gmra.mrb[0].mxu0 %v505
  %v573 = vpop.f32.mrb[0].mxu0
  %v574 = vadd.f32 %v501, %v573
  %v575 = vpop.f32.mrb[0].mxu0
  %576 = vdwg.mxu0
  %v577 = vadd.f32 %v574, %v355
  %v578 = vtanh.pop %v577
  %579 = vmatprep.subr.mxu0 0.0
  %580 = vmatpush1.msra.mxu0 %v34
  %581 = vmatprep.subr.mxu0 0.0
  %582 = vmatpush1.msra.mxu0 %v35
  %583 = vmatprep.subr.mxu0 0.0
  %584 = vmatpush1.msra.mxu0 %v128
  %585 = vmatprep.subr.mxu0 0.0
  %586 = vmatpush1.msra.mxu0 0.0
  %587 = vmatprep.subr.mxu0 0.0
  %588 = vmatpush1.msra.mxu0 0.0
  %589 = vmatprep.subr.mxu0 0.0
  %590 = vmatpush1.msra.mxu0 0.0
  %591 = vmatprep.subr.mxu0 0.0
  %592 = vmatpush1.msra.mxu0 0.0
  %593 = vmatprep.subr.mxu0 0.0
  %594 = vmatpush1.msra.mxu0 0.0
  %595 = vmatprep.subr.mxu0 0.0
  %596 = vmatpush1.msra.mxu0 0.0
  %597 = vmatprep.subr.mxu0 0.0
  %598 = vmatpush1.msra.mxu0 0.0
  %599 = vmatprep.subr.mxu0 0.0
  %600 = vmatpush1.msra.mxu0 0.0
  %601 = vmatprep.subr.mxu0 0.0
  %602 = vmatpush1.msra.mxu0 0.0
  %603 = vmatprep.subr.mxu0 0.0
  %604 = vmatpush1.msra.mxu0 0.0
  %605 = vmatprep.subr.mxu0 0.0
  %606 = vmatpush1.msra.mxu0 0.0
  %607 = vmatprep.subr.mxu0 0.0
  %608 = vmatpush1.msra.mxu0 0.0
  %609 = vmatprep.subr.mxu0 0.0
  %610 = vmatpush1.msra.mxu0 0.0
  %611 = vmatprep.subr.mxu0 0.0
  %612 = vmatpush1.msra.mxu0 0.0
  %613 = vmatprep.subr.mxu0 0.0
  %614 = vmatpush1.msra.mxu0 0.0
  %615 = vmatprep.subr.mxu0 0.0
  %616 = vmatpush1.msra.mxu0 0.0
  %617 = vmatprep.subr.mxu0 0.0
  %618 = vmatpush1.msra.mxu0 0.0
  %619 = vmatprep.subr.mxu0 0.0
  %620 = vmatpush1.msra.mxu0 0.0
  %621 = vmatprep.subr.mxu0 0.0
  %622 = vmatpush1.msra.mxu0 0.0
  %623 = vmatprep.subr.mxu0 0.0
  %624 = vmatpush1.msra.mxu0 0.0
  %625 = vmatprep.subr.mxu0 0.0
  %626 = vmatpush1.msra.mxu0 0.0
  %627 = vmatprep.subr.mxu0 0.0
  %628 = vmatpush1.msra.mxu0 0.0
  %629 = vmatprep.subr.mxu0 0.0
  %630 = vmatpush1.msra.mxu0 0.0
  %631 = vmatprep.subr.mxu0 0.0
  %632 = vmatpush1.msra.mxu0 0.0
  %633 = vmatprep.subr.mxu0 0.0
  %634 = vmatpush1.msra.mxu0 0.0
  %635 = vmatprep.subr.mxu0 0.0
  %636 = vmatpush1.msra.mxu0 0.0
  %637 = vmatprep.subr.mxu0 0.0
  %638 = vmatpush1.msra.mxu0 0.0
  %639 = vmatprep.subr.mxu0 0.0
  %640 = vmatpush1.msra.mxu0 0.0
  %641 = vmatprep.subr.mxu0 0.0
  %642 = vmatpush1.msra.mxu0 0.0
  %643 = vmatprep.mubr.f32.mxu0 0.0
  %644 = vmatmul.mubr.f32.gmra.mrb[0].mxu0 %v505
  %v645 = vpop.f32.mrb[0].mxu0
  %v646 = vadd.f32 0.0, %v645
  %v647 = vpop.f32.mrb[0].mxu0
  %648 = vdwg.mxu0
  %v649 = vadd.f32 %v116, %v646
  %v650 = vtanh.pop %v649
  %v652 = vsel %vm122, %v578, 0
  %654 = vmatprep.subr.mxu0 0.0
  %655 = vmatpush1.msra.mxu0 %v40
  %656 = vmatprep.subr.mxu0 0.0
  %657 = vmatpush1.msra.mxu0 %v41
  %658 = vmatprep.subr.mxu0 0.0
  %659 = vmatpush1.msra.mxu0 %v203
  %660 = vmatprep.subr.mxu0 0.0
  %661 = vmatpush1.msra.mxu0 0.0
  %662 = vmatprep.subr.mxu0 0.0
  %663 = vmatpush1.msra.mxu0 0.0
  %664 = vmatprep.subr.mxu0 0.0
  %665 = vmatpush1.msra.mxu0 0.0
  %666 = vmatprep.subr.mxu0 0.0
  %667 = vmatpush1.msra.mxu0 0.0
  %668 = vmatprep.subr.mxu0 0.0
  %669 = vmatpush1.msra.mxu0 0.0
  %670 = vmatprep.subr.mxu0 0.0
  %671 = vmatpush1.msra.mxu0 0.0
  %672 = vmatprep.subr.mxu0 0.0
  %673 = vmatpush1.msra.mxu0 0.0
  %674 = vmatprep.subr.mxu0 0.0
  %675 = vmatpush1.msra.mxu0 0.0
  %676 = vmatprep.subr.mxu0 0.0
  %677 = vmatpush1.msra.mxu0 0.0
  %678 = vmatprep.subr.mxu0 0.0
  %679 = vmatpush1.msra.mxu0 0.0
  %680 = vmatprep.subr.mxu0 0.0
  %681 = vmatpush1.msra.mxu0 0.0
  %682 = vmatprep.subr.mxu0 0.0
  %683 = vmatpush1.msra.mxu0 0.0
  %684 = vmatprep.subr.mxu0 0.0
  %685 = vmatpush1.msra.mxu0 0.0
  %686 = vmatprep.subr.mxu0 0.0
  %687 = vmatpush1.msra.mxu0 0.0
  %688 = vmatprep.subr.mxu0 0.0
  %689 = vmatpush1.msra.mxu0 0.0
  %690 = vmatprep.subr.mxu0 0.0
  %691 = vmatpush1.msra.mxu0 0.0
  %692 = vmatprep.subr.mxu0 0.0
  %693 = vmatpush1.msra.mxu0 0.0
  %694 = vmatprep.subr.mxu0 0.0
  %695 = vmatpush1.msra.mxu0 0.0
  %696 = vmatprep.subr.mxu0 0.0
  %697 = vmatpush1.msra.mxu0 0.0
  %698 = vmatprep.subr.mxu0 0.0
  %699 = vmatpush1.msra.mxu0 0.0
  %700 = vmatprep.subr.mxu0 0.0
  %701 = vmatpush1.msra.mxu0 0.0
  %702 = vmatprep.subr.mxu0 0.0
  %703 = vmatpush1.msra.mxu0 0.0
  %704 = vmatprep.subr.mxu0 0.0
  %705 = vmatpush1.msra.mxu0 0.0
  %706 = vmatprep.subr.mxu0 0.0
  %707 = vmatpush1.msra.mxu0 0.0
  %708 = vmatprep.subr.mxu0 0.0
  %709 = vmatpush1.msra.mxu0 0.0
  %710 = vmatprep.subr.mxu0 0.0
  %711 = vmatpush1.msra.mxu0 0.0
  %712 = vmatprep.subr.mxu0 0.0
  %713 = vmatpush1.msra.mxu0 0.0
  %714 = vmatprep.subr.mxu0 0.0
  %715 = vmatpush1.msra.mxu0 0.0
  %716 = vmatprep.subr.mxu0 0.0
  %717 = vmatpush1.msra.mxu0 0.0
  %718 = vmatprep.mubr.f32.mxu0 0.0
  %719 = vmatmul.mubr.f32.gmra.mrb[0].mxu0 %v652
  %v720 = vpop.f32.mrb[0].mxu0
  %v721 = vadd.f32 0.0, %v720
  %v722 = vpop.f32.mrb[0].mxu0
  %723 = vdwg.mxu0
  %v725 = vsel %vm122, %v650, 0
  %727 = vmatprep.subr.mxu0 0.0
  %728 = vmatpush1.msra.mxu0 %v37
  %729 = vmatprep.subr.mxu0 0.0
  %730 = vmatpush1.msra.mxu0 %v38
  %731 = vmatprep.subr.mxu0 0.0
  %732 = vmatpush1.msra.mxu0 %v279
  %733 = vmatprep.subr.mxu0 0.0
  %734 = vmatpush1.msra.mxu0 0.0
  %735 = vmatprep.subr.mxu0 0.0
  %736 = vmatpush1.msra.mxu0 0.0
  %737 = vmatprep.subr.mxu0 0.0
  %738 = vmatpush1.msra.mxu0 0.0
  %739 = vmatprep.subr.mxu0 0.0
  %740 = vmatpush1.msra.mxu0 0.0
  %741 = vmatprep.subr.mxu0 0.0
  %742 = vmatpush1.msra.mxu0 0.0
  %743 = vmatprep.subr.mxu0 0.0
  %744 = vmatpush1.msra.mxu0 0.0
  %745 = vmatprep.subr.mxu0 0.0
  %746 = vmatpush1.msra.mxu0 0.0
  %747 = vmatprep.subr.mxu0 0.0
  %748 = vmatpush1.msra.mxu0 0.0
  %749 = vmatprep.subr.mxu0 0.0
  %750 = vmatpush1.msra.mxu0 0.0
  %751 = vmatprep.subr.mxu0 0.0
  %752 = vmatpush1.msra.mxu0 0.0
  %753 = vmatprep.subr.mxu0 0.0
  %754 = vmatpush1.msra.mxu0 0.0
  %755 = vmatprep.subr.mxu0 0.0
  %756 = vmatpush1.msra.mxu0 0.0
  %757 = vmatprep.subr.mxu0 0.0
  %758 = vmatpush1.msra.mxu0 0.0
  %759 = vmatprep.subr.mxu0 0.0
  %760 = vmatpush1.msra.mxu0 0.0
  %761 = vmatprep.subr.mxu0 0.0
  %762 = vmatpush1.msra.mxu0 0.0
  %763 = vmatprep.subr.mxu0 0.0
  %764 = vmatpush1.msra.mxu0 0.0
  %765 = vmatprep.subr.mxu0 0.0
  %766 = vmatpush1.msra.mxu0 0.0
  %767 = vmatprep.subr.mxu0 0.0
  %768 = vmatpush1.msra.mxu0 0.0
  %769 = vmatprep.subr.mxu0 0.0
  %770 = vmatpush1.msra.mxu0 0.0
  %771 = vmatprep.subr.mxu0 0.0
  %772 = vmatpush1.msra.mxu0 0.0
  %773 = vmatprep.subr.mxu0 0.0
  %774 = vmatpush1.msra.mxu0 0.0
  %775 = vmatprep.subr.mxu0 0.0
  %776 = vmatpush1.msra.mxu0 0.0
  %777 = vmatprep.subr.mxu0 0.0
  %778 = vmatpush1.msra.mxu0 0.0
  %779 = vmatprep.subr.mxu0 0.0
  %780 = vmatpush1.msra.mxu0 0.0
  %781 = vmatprep.subr.mxu0 0.0
  %782 = vmatpush1.msra.mxu0 0.0
  %783 = vmatprep.subr.mxu0 0.0
  %784 = vmatpush1.msra.mxu0 0.0
  %785 = vmatprep.subr.mxu0 0.0
  %786 = vmatpush1.msra.mxu0 0.0
  %787 = vmatprep.subr.mxu0 0.0
  %788 = vmatpush1.msra.mxu0 0.0
  %789 = vmatprep.subr.mxu0 0.0
  %790 = vmatpush1.msra.mxu0 0.0
  %791 = vmatprep.mubr.f32.mxu0 0.0
  %792 = vmatmul.mubr.f32.gmra.mrb[0].mxu0 %v725
  %v793 = vpop.f32.mrb[0].mxu0
  %v794 = vadd.f32 %v721, %v793
  %v795 = vpop.f32.mrb[0].mxu0
  %796 = vdwg.mxu0
  %v797 = vadd.f32 %v794, %v355
  %v798 = vtanh.pop %v797
  %799 = vmatprep.subr.mxu0 0.0
  %800 = vmatpush1.msra.mxu0 %v34
  %801 = vmatprep.subr.mxu0 0.0
  %802 = vmatpush1.msra.mxu0 %v35
  %803 = vmatprep.subr.mxu0 0.0
  %804 = vmatpush1.msra.mxu0 %v128
  %805 = vmatprep.subr.mxu0 0.0
  %806 = vmatpush1.msra.mxu0 0.0
  %807 = vmatprep.subr.mxu0 0.0
  %808 = vmatpush1.msra.mxu0 0.0
  %809 = vmatprep.subr.mxu0 0.0
  %810 = vmatpush1.msra.mxu0 0.0
  %811 = vmatprep.subr.mxu0 0.0
  %812 = vmatpush1.msra.mxu0 0.0
  %813 = vmatprep.subr.mxu0 0.0
  %814 = vmatpush1.msra.mxu0 0.0
  %815 = vmatprep.subr.mxu0 0.0
  %816 = vmatpush1.msra.mxu0 0.0
  %817 = vmatprep.subr.mxu0 0.0
  %818 = vmatpush1.msra.mxu0 0.0
  %819 = vmatprep.subr.mxu0 0.0
  %820 = vmatpush1.msra.mxu0 0.0
  %821 = vmatprep.subr.mxu0 0.0
  %822 = vmatpush1.msra.mxu0 0.0
  %823 = vmatprep.subr.mxu0 0.0
  %824 = vmatpush1.msra.mxu0 0.0
  %825 = vmatprep.subr.mxu0 0.0
  %826 = vmatpush1.msra.mxu0 0.0
  %827 = vmatprep.subr.mxu0 0.0
  %828 = vmatpush1.msra.mxu0 0.0
  %829 = vmatprep.subr.mxu0 0.0
  %830 = vmatpush1.msra.mxu0 0.0
  %831 = vmatprep.subr.mxu0 0.0
  %832 = vmatpush1.msra.mxu0 0.0
  %833 = vmatprep.subr.mxu0 0.0
  %834 = vmatpush1.msra.mxu0 0.0
  %835 = vmatprep.subr.mxu0 0.0
  %836 = vmatpush1.msra.mxu0 0.0
  %837 = vmatprep.subr.mxu0 0.0
  %838 = vmatpush1.msra.mxu0 0.0
  %839 = vmatprep.subr.mxu0 0.0
  %840 = vmatpush1.msra.mxu0 0.0
  %841 = vmatprep.subr.mxu0 0.0
  %842 = vmatpush1.msra.mxu0 0.0
  %843 = vmatprep.subr.mxu0 0.0
  %844 = vmatpush1.msra.mxu0 0.0
  %845 = vmatprep.subr.mxu0 0.0
  %846 = vmatpush1.msra.mxu0 0.0
  %847 = vmatprep.subr.mxu0 0.0
  %848 = vmatpush1.msra.mxu0 0.0
  %849 = vmatprep.subr.mxu0 0.0
  %850 = vmatpush1.msra.mxu0 0.0
  %851 = vmatprep.subr.mxu0 0.0
  %852 = vmatpush1.msra.mxu0 0.0
  %853 = vmatprep.subr.mxu0 0.0
  %854 = vmatpush1.msra.mxu0 0.0
  %855 = vmatprep.subr.mxu0 0.0
  %856 = vmatpush1.msra.mxu0 0.0
  %857 = vmatprep.subr.mxu0 0.0
  %858 = vmatpush1.msra.mxu0 0.0
  %859 = vmatprep.subr.mxu0 0.0
  %860 = vmatpush1.msra.mxu0 0.0
  %861 = vmatprep.subr.mxu0 0.0
  %862 = vmatpush1.msra.mxu0 0.0
  %863 = vmatprep.mubr.f32.mxu0 0.0
  %864 = vmatmul.mubr.f32.gmra.mrb[0].mxu0 %v725
  %v865 = vpop.f32.mrb[0].mxu0
  %v866 = vadd.f32 0.0, %v865
  %v867 = vpop.f32.mrb[0].mxu0
  %868 = vdwg.mxu0
  %v869 = vadd.f32 %v117, %v866
  %v870 = vtanh.pop %v869
  %v872 = vsel %vm122, %v798, 0
  %874 = vmatprep.subr.mxu0 0.0
  %875 = vmatpush1.msra.mxu0 %v40
  %876 = vmatprep.subr.mxu0 0.0
  %877 = vmatpush1.msra.mxu0 %v41
  %878 = vmatprep.subr.mxu0 0.0
  %879 = vmatpush1.msra.mxu0 %v203
  %880 = vmatprep.subr.mxu0 0.0
  %881 = vmatpush1.msra.mxu0 0.0
  %882 = vmatprep.subr.mxu0 0.0
  %883 = vmatpush1.msra.mxu0 0.0
  %884 = vmatprep.subr.mxu0 0.0
  %885 = vmatpush1.msra.mxu0 0.0
  %886 = vmatprep.subr.mxu0 0.0
  %887 = vmatpush1.msra.mxu0 0.0
  %888 = vmatprep.subr.mxu0 0.0
  %889 = vmatpush1.msra.mxu0 0.0
  %890 = vmatprep.subr.mxu0 0.0
  %891 = vmatpush1.msra.mxu0 0.0
  %892 = vmatprep.subr.mxu0 0.0
  %893 = vmatpush1.msra.mxu0 0.0
  %894 = vmatprep.subr.mxu0 0.0
  %895 = vmatpush1.msra.mxu0 0.0
  %896 = vmatprep.subr.mxu0 0.0
  %897 = vmatpush1.msra.mxu0 0.0
  %898 = vmatprep.subr.mxu0 0.0
  %899 = vmatpush1.msra.mxu0 0.0
  %900 = vmatprep.subr.mxu0 0.0
  %901 = vmatpush1.msra.mxu0 0.0
  %902 = vmatprep.subr.mxu0 0.0
  %903 = vmatpush1.msra.mxu0 0.0
  %904 = vmatprep.subr.mxu0 0.0
  %905 = vmatpush1.msra.mxu0 0.0
  %906 = vmatprep.subr.mxu0 0.0
  %907 = vmatpush1.msra.mxu0 0.0
  %908 = vmatprep.subr.mxu0 0.0
  %909 = vmatpush1.msra.mxu0 0.0
  %910 = vmatprep.subr.mxu0 0.0
  %911 = vmatpush1.msra.mxu0 0.0
  %912 = vmatprep.subr.mxu0 0.0
  %913 = vmatpush1.msra.mxu0 0.0
  %914 = vmatprep.subr.mxu0 0.0
  %915 = vmatpush1.msra.mxu0 0.0
  %916 = vmatprep.subr.mxu0 0.0
  %917 = vmatpush1.msra.mxu0 0.0
  %918 = vmatprep.subr.mxu0 0.0
  %919 = vmatpush1.msra.mxu0 0.0
  %920 = vmatprep.subr.mxu0 0.0
  %921 = vmatpush1.msra.mxu0 0.0
  %922 = vmatprep.subr.mxu0 0.0
  %923 = vmatpush1.msra.mxu0 0.0
  %924 = vmatprep.subr.mxu0 0.0
  %925 = vmatpush1.msra.mxu0 0.0
  %926 = vmatprep.subr.mxu0 0.0
  %927 = vmatpush1.msra.mxu0 0.0
  %928 = vmatprep.subr.mxu0 0.0
  %929 = vmatpush1.msra.mxu0 0.0
  %930 = vmatprep.subr.mxu0 0.0
  %931 = vmatpush1.msra.mxu0 0.0
  %932 = vmatprep.subr.mxu0 0.0
  %933 = vmatpush1.msra.mxu0 0.0
  %934 = vmatprep.subr.mxu0 0.0
  %935 = vmatpush1.msra.mxu0 0.0
  %936 = vmatprep.subr.mxu0 0.0
  %937 = vmatpush1.msra.mxu0 0.0
  %938 = vmatprep.mubr.f32.mxu0 0.0
  %939 = vmatmul.mubr.f32.gmra.mrb[0].mxu0 %v872
  %v940 = vpop.f32.mrb[0].mxu0
  %v941 = vadd.f32 0.0, %v940
  %v942 = vpop.f32.mrb[0].mxu0
  %943 = vdwg.mxu0
  %v945 = vsel %vm122, %v870, 0
  %947 = vmatprep.subr.mxu0 0.0
  %948 = vmatpush1.msra.mxu0 %v37
  %949 = vmatprep.subr.mxu0 0.0
  %950 = vmatpush1.msra.mxu0 %v38
  %951 = vmatprep.subr.mxu0 0.0
  %952 = vmatpush1.msra.mxu0 %v279
  %953 = vmatprep.subr.mxu0 0.0
  %954 = vmatpush1.msra.mxu0 0.0
  %955 = vmatprep.subr.mxu0 0.0
  %956 = vmatpush1.msra.mxu0 0.0
  %957 = vmatprep.subr.mxu0 0.0
  %958 = vmatpush1.msra.mxu0 0.0
  %959 = vmatprep.subr.mxu0 0.0
  %960 = vmatpush1.msra.mxu0 0.0
  %961 = vmatprep.subr.mxu0 0.0
  %962 = vmatpush1.msra.mxu0 0.0
  %963 = vmatprep.subr.mxu0 0.0
  %964 = vmatpush1.msra.mxu0 0.0
  %965 = vmatprep.subr.mxu0 0.0
  %966 = vmatpush1.msra.mxu0 0.0
  %967 = vmatprep.subr.mxu0 0.0
  %968 = vmatpush1.msra.mxu0 0.0
  %969 = vmatprep.subr.mxu0 0.0
  %970 = vmatpush1.msra.mxu0 0.0
  %971 = vmatprep.subr.mxu0 0.0
  %972 = vmatpush1.msra.mxu0 0.0
  %973 = vmatprep.subr.mxu0 0.0
  %974 = vmatpush1.msra.mxu0 0.0
  %975 = vmatprep.subr.mxu0 0.0
  %976 = vmatpush1.msra.mxu0 0.0
  %977 = vmatprep.subr.mxu0 0.0
  %978 = vmatpush1.msra.mxu0 0.0
  %979 = vmatprep.subr.mxu0 0.0
  %980 = vmatpush1.msra.mxu0 0.0
  %981 = vmatprep.subr.mxu0 0.0
  %982 = vmatpush1.msra.mxu0 0.0
  %983 = vmatprep.subr.mxu0 0.0
  %984 = vmatpush1.msra.mxu0 0.0
  %985 = vmatprep.subr.mxu0 0.0
  %986 = vmatpush1.msra.mxu0 0.0
  %987 = vmatprep.subr.mxu0 0.0
  %988 = vmatpush1.msra.mxu0 0.0
  %989 = vmatprep.subr.mxu0 0.0
  %990 = vmatpush1.msra.mxu0 0.0
  %991 = vmatprep.subr.mxu0 0.0
  %992 = vmatpush1.msra.mxu0 0.0
  %993 = vmatprep.subr.mxu0 0.0
  %994 = vmatpush1.msra.mxu0 0.0
  %995 = vmatprep.subr.mxu0 0.0
  %996 = vmatpush1.msra.mxu0 0.0
  %997 = vmatprep.subr.mxu0 0.0
  %998 = vmatpush1.msra.mxu0 0.0
  %999 = vmatprep.subr.mxu0 0.0
  %1000 = vmatpush1.msra.mxu0 0.0
  %1001 = vmatprep.subr.mxu0 0.0
  %1002 = vmatpush1.msra.mxu0 0.0
  %1003 = vmatprep.subr.mxu0 0.0
  %1004 = vmatpush1.msra.mxu0 0.0
  %1005 = vmatprep.subr.mxu0 0.0
  %1006 = vmatpush1.msra.mxu0 0.0
  %1007 = vmatprep.subr.mxu0 0.0
  %1008 = vmatpush1.msra.mxu0 0.0
  %1009 = vmatprep.subr.mxu0 0.0
  %1010 = vmatpush1.msra.mxu0 0.0
  %1011 = vmatprep.mubr.f32.mxu0 0.0
  %1012 = vmatmul.mubr.f32.gmra.mrb[0].mxu0 %v945
  %v1013 = vpop.f32.mrb[0].mxu0
  %v1014 = vadd.f32 %v941, %v1013
  %v1015 = vpop.f32.mrb[0].mxu0
  %1016 = vdwg.mxu0
  %v1017 = vadd.f32 %v1014, %v355
  %v1018 = vtanh.pop %v1017
  %1019 = vmatprep.subr.mxu0 0.0
  %1020 = vmatpush1.msra.mxu0 %v34
  %1021 = vmatprep.subr.mxu0 0.0
  %1022 = vmatpush1.msra.mxu0 %v35
  %1023 = vmatprep.subr.mxu0 0.0
  %1024 = vmatpush1.msra.mxu0 %v128
  %1025 = vmatprep.subr.mxu0 0.0
  %1026 = vmatpush1.msra.mxu0 0.0
  %1027 = vmatprep.subr.mxu0 0.0
  %1028 = vmatpush1.msra.mxu0 0.0
  %1029 = vmatprep.subr.mxu0 0.0
  %1030 = vmatpush1.msra.mxu0 0.0
  %1031 = vmatprep.subr.mxu0 0.0
  %1032 = vmatpush1.msra.mxu0 0.0
  %1033 = vmatprep.subr.mxu0 0.0
  %1034 = vmatpush1.msra.mxu0 0.0
  %1035 = vmatprep.subr.mxu0 0.0
  %1036 = vmatpush1.msra.mxu0 0.0
  %1037 = vmatprep.subr.mxu0 0.0
  %1038 = vmatpush1.msra.mxu0 0.0
  %1039 = vmatprep.subr.mxu0 0.0
  %1040 = vmatpush1.msra.mxu0 0.0
  %1041 = vmatprep.subr.mxu0 0.0
  %1042 = vmatpush1.msra.mxu0 0.0
  %1043 = vmatprep.subr.mxu0 0.0
  %1044 = vmatpush1.msra.mxu0 0.0
  %1045 = vmatprep.subr.mxu0 0.0
  %1046 = vmatpush1.msra.mxu0 0.0
  %1047 = vmatprep.subr.mxu0 0.0
  %1048 = vmatpush1.msra.mxu0 0.0
  %1049 = vmatprep.subr.mxu0 0.0
  %1050 = vmatpush1.msra.mxu0 0.0
  %1051 = vmatprep.subr.mxu0 0.0
  %1052 = vmatpush1.msra.mxu0 0.0
  %1053 = vmatprep.subr.mxu0 0.0
  %1054 = vmatpush1.msra.mxu0 0.0
  %1055 = vmatprep.subr.mxu0 0.0
  %1056 = vmatpush1.msra.mxu0 0.0
  %1057 = vmatprep.subr.mxu0 0.0
  %1058 = vmatpush1.msra.mxu0 0.0
  %1059 = vmatprep.subr.mxu0 0.0
  %1060 = vmatpush1.msra.mxu0 0.0
  %1061 = vmatprep.subr.mxu0 0.0
  %1062 = vmatpush1.msra.mxu0 0.0
  %1063 = vmatprep.subr.mxu0 0.0
  %1064 = vmatpush1.msra.mxu0 0.0
  %1065 = vmatprep.subr.mxu0 0.0
  %1066 = vmatpush1.msra.mxu0 0.0
  %1067 = vmatprep.subr.mxu0 0.0
  %1068 = vmatpush1.msra.mxu0 0.0
  %1069 = vmatprep.subr.mxu0 0.0
  %1070 = vmatpush1.msra.mxu0 0.0
  %1071 = vmatprep.subr.mxu0 0.0
  %1072 = vmatpush1.msra.mxu0 0.0
  %1073 = vmatprep.subr.mxu0 0.0
  %1074 = vmatpush1.msra.mxu0 0.0
  %1075 = vmatprep.subr.mxu0 0.0
  %1076 = vmatpush1.msra.mxu0 0.0
  %1077 = vmatprep.subr.mxu0 0.0
  %1078 = vmatpush1.msra.mxu0 0.0
  %1079 = vmatprep.subr.mxu0 0.0
  %1080 = vmatpush1.msra.mxu0 0.0
  %1081 = vmatprep.subr.mxu0 0.0
  %1082 = vmatpush1.msra.mxu0 0.0
  %1083 = vmatprep.mubr.f32.mxu0 0.0
  %1084 = vmatmul.mubr.f32.gmra.mrb[0].mxu0 %v945
  %v1085 = vpop.f32.mrb[0].mxu0
  %v1086 = vadd.f32 0.0, %v1085
  %v1087 = vpop.f32.mrb[0].mxu0
  %1088 = vdwg.mxu0
  %v1089 = vadd.f32 %v118, %v1086
  %v1090 = vtanh.pop %v1089
  %v1092 = vsel %vm122, %v1018, 0
  %1094 = vmatprep.subr.mxu0 0.0
  %1095 = vmatpush1.msra.mxu0 %v40
  %1096 = vmatprep.subr.mxu0 0.0
  %1097 = vmatpush1.msra.mxu0 %v41
  %1098 = vmatprep.subr.mxu0 0.0
  %1099 = vmatpush1.msra.mxu0 %v203
  %1100 = vmatprep.subr.mxu0 0.0
  %1101 = vmatpush1.msra.mxu0 0.0
  %1102 = vmatprep.subr.mxu0 0.0
  %1103 = vmatpush1.msra.mxu0 0.0
  %1104 = vmatprep.subr.mxu0 0.0
  %1105 = vmatpush1.msra.mxu0 0.0
  %1106 = vmatprep.subr.mxu0 0.0
  %1107 = vmatpush1.msra.mxu0 0.0
  %1108 = vmatprep.subr.mxu0 0.0
  %1109 = vmatpush1.msra.mxu0 0.0
  %1110 = vmatprep.subr.mxu0 0.0
  %1111 = vmatpush1.msra.mxu0 0.0
  %1112 = vmatprep.subr.mxu0 0.0
  %1113 = vmatpush1.msra.mxu0 0.0
  %1114 = vmatprep.subr.mxu0 0.0
  %1115 = vmatpush1.msra.mxu0 0.0
  %1116 = vmatprep.subr.mxu0 0.0
  %1117 = vmatpush1.msra.mxu0 0.0
  %1118 = vmatprep.subr.mxu0 0.0
  %1119 = vmatpush1.msra.mxu0 0.0
  %1120 = vmatprep.subr.mxu0 0.0
  %1121 = vmatpush1.msra.mxu0 0.0
  %1122 = vmatprep.subr.mxu0 0.0
  %1123 = vmatpush1.msra.mxu0 0.0
  %1124 = vmatprep.subr.mxu0 0.0
  %1125 = vmatpush1.msra.mxu0 0.0
  %1126 = vmatprep.subr.mxu0 0.0
  %1127 = vmatpush1.msra.mxu0 0.0
  %1128 = vmatprep.subr.mxu0 0.0
  %1129 = vmatpush1.msra.mxu0 0.0
  %1130 = vmatprep.subr.mxu0 0.0
  %1131 = vmatpush1.msra.mxu0 0.0
  %1132 = vmatprep.subr.mxu0 0.0
  %1133 = vmatpush1.msra.mxu0 0.0
  %1134 = vmatprep.subr.mxu0 0.0
  %1135 = vmatpush1.msra.mxu0 0.0
  %1136 = vmatprep.subr.mxu0 0.0
  %1137 = vmatpush1.msra.mxu0 0.0
  %1138 = vmatprep.subr.mxu0 0.0
  %1139 = vmatpush1.msra.mxu0 0.0
  %1140 = vmatprep.subr.mxu0 0.0
  %1141 = vmatpush1.msra.mxu0 0.0
  %1142 = vmatprep.subr.mxu0 0.0
  %1143 = vmatpush1.msra.mxu0 0.0
  %1144 = vmatprep.subr.mxu0 0.0
  %1145 = vmatpush1.msra.mxu0 0.0
  %1146 = vmatprep.subr.mxu0 0.0
  %1147 = vmatpush1.msra.mxu0 0.0
  %1148 = vmatprep.subr.mxu0 0.0
  %1149 = vmatpush1.msra.mxu0 0.0
  %1150 = vmatprep.subr.mxu0 0.0
  %1151 = vmatpush1.msra.mxu0 0.0
  %1152 = vmatprep.subr.mxu0 0.0
  %1153 = vmatpush1.msra.mxu0 0.0
  %1154 = vmatprep.subr.mxu0 0.0
  %1155 = vmatpush1.msra.mxu0 0.0
  %1156 = vmatprep.subr.mxu0 0.0
  %1157 = vmatpush1.msra.mxu0 0.0
  %1158 = vmatprep.mubr.f32.mxu0 0.0
  %1159 = vmatmul.mubr.f32.gmra.mrb[0].mxu0 %v1092
  %v1160 = vpop.f32.mrb[0].mxu0
  %v1161 = vadd.f32 0.0, %v1160
  %v1162 = vpop.f32.mrb[0].mxu0
  %1163 = vdwg.mxu0
  %v1165 = vsel %vm122, %v1090, 0
  %1167 = vmatprep.subr.mxu0 0.0
  %1168 = vmatpush1.msra.mxu0 %v37
  %1169 = vmatprep.subr.mxu0 0.0
  %1170 = vmatpush1.msra.mxu0 %v38
  %1171 = vmatprep.subr.mxu0 0.0
  %1172 = vmatpush1.msra.mxu0 %v279
  %1173 = vmatprep.subr.mxu0 0.0
  %1174 = vmatpush1.msra.mxu0 0.0
  %1175 = vmatprep.subr.mxu0 0.0
  %1176 = vmatpush1.msra.mxu0 0.0
  %1177 = vmatprep.subr.mxu0 0.0
  %1178 = vmatpush1.msra.mxu0 0.0
  %1179 = vmatprep.subr.mxu0 0.0
  %1180 = vmatpush1.msra.mxu0 0.0
  %1181 = vmatprep.subr.mxu0 0.0
  %1182 = vmatpush1.msra.mxu0 0.0
  %1183 = vmatprep.subr.mxu0 0.0
  %1184 = vmatpush1.msra.mxu0 0.0
  %1185 = vmatprep.subr.mxu0 0.0
  %1186 = vmatpush1.msra.mxu0 0.0
  %1187 = vmatprep.subr.mxu0 0.0
  %1188 = vmatpush1.msra.mxu0 0.0
  %1189 = vmatprep.subr.mxu0 0.0
  %1190 = vmatpush1.msra.mxu0 0.0
  %1191 = vmatprep.subr.mxu0 0.0
  %1192 = vmatpush1.msra.mxu0 0.0
  %1193 = vmatprep.subr.mxu0 0.0
  %1194 = vmatpush1.msra.mxu0 0.0
  %1195 = vmatprep.subr.mxu0 0.0
  %1196 = vmatpush1.msra.mxu0 0.0
  %1197 = vmatprep.subr.mxu0 0.0
  %1198 = vmatpush1.msra.mxu0 0.0
  %1199 = vmatprep.subr.mxu0 0.0
  %1200 = vmatpush1.msra.mxu0 0.0
  %1201 = vmatprep.subr.mxu0 0.0
  %1202 = vmatpush1.msra.mxu0 0.0
  %1203 = vmatprep.subr.mxu0 0.0
  %1204 = vmatpush1.msra.mxu0 0.0
  %1205 = vmatprep.subr.mxu0 0.0
  %1206 = vmatpush1.msra.mxu0 0.0
  %1207 = vmatprep.subr.mxu0 0.0
  %1208 = vmatpush1.msra.mxu0 0.0
  %1209 = vmatprep.subr.mxu0 0.0
  %1210 = vmatpush1.msra.mxu0 0.0
  %1211 = vmatprep.subr.mxu0 0.0
  %1212 = vmatpush1.msra.mxu0 0.0
  %1213 = vmatprep.subr.mxu0 0.0
  %1214 = vmatpush1.msra.mxu0 0.0
  %1215 = vmatprep.subr.mxu0 0.0
  %1216 = vmatpush1.msra.mxu0 0.0
  %1217 = vmatprep.subr.mxu0 0.0
  %1218 = vmatpush1.msra.mxu0 0.0
  %1219 = vmatprep.subr.mxu0 0.0
  %1220 = vmatpush1.msra.mxu0 0.0
  %1221 = vmatprep.subr.mxu0 0.0
  %1222 = vmatpush1.msra.mxu0 0.0
  %1223 = vmatprep.subr.mxu0 0.0
  %1224 = vmatpush1.msra.mxu0 0.0
  %1225 = vmatprep.subr.mxu0 0.0
  %1226 = vmatpush1.msra.mxu0 0.0
  %1227 = vmatprep.subr.mxu0 0.0
  %1228 = vmatpush1.msra.mxu0 0.0
  %1229 = vmatprep.subr.mxu0 0.0
  %1230 = vmatpush1.msra.mxu0 0.0
  %1231 = vmatprep.mubr.f32.mxu0 0.0
  %1232 = vmatmul.mubr.f32.gmra.mrb[0].mxu0 %v1165
  %v1233 = vpop.f32.mrb[0].mxu0
  %v1234 = vadd.f32 %v1161, %v1233
  %v1235 = vpop.f32.mrb[0].mxu0
  %1236 = vdwg.mxu0
  %v1237 = vadd.f32 %v1234, %v355
  %v1238 = vtanh.pop %v1237
  %1239 = vmatprep.subr.mxu0 0.0
  %1240 = vmatpush1.msra.mxu0 %v34
  %1241 = vmatprep.subr.mxu0 0.0
  %1242 = vmatpush1.msra.mxu0 %v35
  %1243 = vmatprep.subr.mxu0 0.0
  %1244 = vmatpush1.msra.mxu0 %v128
  %1245 = vmatprep.subr.mxu0 0.0
  %1246 = vmatpush1.msra.mxu0 0.0
  %1247 = vmatprep.subr.mxu0 0.0
  %1248 = vmatpush1.msra.mxu0 0.0
  %1249 = vmatprep.subr.mxu0 0.0
  %1250 = vmatpush1.msra.mxu0 0.0
  %1251 = vmatprep.subr.mxu0 0.0
  %1252 = vmatpush1.msra.mxu0 0.0
  %1253 = vmatprep.subr.mxu0 0.0
  %1254 = vmatpush1.msra.mxu0 0.0
  %1255 = vmatprep.subr.mxu0 0.0
  %1256 = vmatpush1.msra.mxu0 0.0
  %1257 = vmatprep.subr.mxu0 0.0
  %1258 = vmatpush1.msra.mxu0 0.0
  %1259 = vmatprep.subr.mxu0 0.0
  %1260 = vmatpush1.msra.mxu0 0.0
  %1261 = vmatprep.subr.mxu0 0.0
  %1262 = vmatpush1.msra.mxu0 0.0
  %1263 = vmatprep.subr.mxu0 0.0
  %1264 = vmatpush1.msra.mxu0 0.0
  %1265 = vmatprep.subr.mxu0 0.0
  %1266 = vmatpush1.msra.mxu0 0.0
  %1267 = vmatprep.subr.mxu0 0.0
  %1268 = vmatpush1.msra.mxu0 0.0
  %1269 = vmatprep.subr.mxu0 0.0
  %1270 = vmatpush1.msra.mxu0 0.0
  %1271 = vmatprep.subr.mxu0 0.0
  %1272 = vmatpush1.msra.mxu0 0.0
  %1273 = vmatprep.subr.mxu0 0.0
  %1274 = vmatpush1.msra.mxu0 0.0
  %1275 = vmatprep.subr.mxu0 0.0
  %1276 = vmatpush1.msra.mxu0 0.0
  %1277 = vmatprep.subr.mxu0 0.0
  %1278 = vmatpush1.msra.mxu0 0.0
  %1279 = vmatprep.subr.mxu0 0.0
  %1280 = vmatpush1.msra.mxu0 0.0
  %1281 = vmatprep.subr.mxu0 0.0
  %1282 = vmatpush1.msra.mxu0 0.0
  %1283 = vmatprep.subr.mxu0 0.0
  %1284 = vmatpush1.msra.mxu0 0.0
  %1285 = vmatprep.subr.mxu0 0.0
  %1286 = vmatpush1.msra.mxu0 0.0
  %1287 = vmatprep.subr.mxu0 0.0
  %1288 = vmatpush1.msra.mxu0 0.0
  %1289 = vmatprep.subr.mxu0 0.0
  %1290 = vmatpush1.msra.mxu0 0.0
  %1291 = vmatprep.subr.mxu0 0.0
  %1292 = vmatpush1.msra.mxu0 0.0
  %1293 = vmatprep.subr.mxu0 0.0
  %1294 = vmatpush1.msra.mxu0 0.0
  %1295 = vmatprep.subr.mxu0 0.0
  %1296 = vmatpush1.msra.mxu0 0.0
  %1297 = vmatprep.subr.mxu0 0.0
  %1298 = vmatpush1.msra.mxu0 0.0
  %1299 = vmatprep.subr.mxu0 0.0
  %1300 = vmatpush1.msra.mxu0 0.0
  %1301 = vmatprep.subr.mxu0 0.0
  %1302 = vmatpush1.msra.mxu0 0.0
  %1303 = vmatprep.mubr.f32.mxu0 0.0
  %1304 = vmatmul.mubr.f32.gmra.mrb[0].mxu0 %v1165
  %v1305 = vpop.f32.mrb[0].mxu0
  %v1306 = vadd.f32 0.0, %v1305
  %v1307 = vpop.f32.mrb[0].mxu0
  %1308 = vdwg.mxu0
  %v1309 = vadd.f32 %v119, %v1306
  %v1310 = vtanh.pop %v1309
  %v1312 = vsel %vm122, %v1238, 0
  %1314 = vmatprep.subr.mxu0 0.0
  %1315 = vmatpush1.msra.mxu0 %v40
  %1316 = vmatprep.subr.mxu0 0.0
  %1317 = vmatpush1.msra.mxu0 %v41
  %1318 = vmatprep.subr.mxu0 0.0
  %1319 = vmatpush1.msra.mxu0 %v203
  %1320 = vmatprep.subr.mxu0 0.0
  %1321 = vmatpush1.msra.mxu0 0.0
  %1322 = vmatprep.subr.mxu0 0.0
  %1323 = vmatpush1.msra.mxu0 0.0
  %1324 = vmatprep.subr.mxu0 0.0
  %1325 = vmatpush1.msra.mxu0 0.0
  %1326 = vmatprep.subr.mxu0 0.0
  %1327 = vmatpush1.msra.mxu0 0.0
  %1328 = vmatprep.subr.mxu0 0.0
  %1329 = vmatpush1.msra.mxu0 0.0
  %1330 = vmatprep.subr.mxu0 0.0
  %1331 = vmatpush1.msra.mxu0 0.0
  %1332 = vmatprep.subr.mxu0 0.0
  %1333 = vmatpush1.msra.mxu0 0.0
  %1334 = vmatprep.subr.mxu0 0.0
  %1335 = vmatpush1.msra.mxu0 0.0
  %1336 = vmatprep.subr.mxu0 0.0
  %1337 = vmatpush1.msra.mxu0 0.0
  %1338 = vmatprep.subr.mxu0 0.0
  %1339 = vmatpush1.msra.mxu0 0.0
  %1340 = vmatprep.subr.mxu0 0.0
  %1341 = vmatpush1.msra.mxu0 0.0
  %1342 = vmatprep.subr.mxu0 0.0
  %1343 = vmatpush1.msra.mxu0 0.0
  %1344 = vmatprep.subr.mxu0 0.0
  %1345 = vmatpush1.msra.mxu0 0.0
  %1346 = vmatprep.subr.mxu0 0.0
  %1347 = vmatpush1.msra.mxu0 0.0
  %1348 = vmatprep.subr.mxu0 0.0
  %1349 = vmatpush1.msra.mxu0 0.0
  %1350 = vmatprep.subr.mxu0 0.0
  %1351 = vmatpush1.msra.mxu0 0.0
  %1352 = vmatprep.subr.mxu0 0.0
  %1353 = vmatpush1.msra.mxu0 0.0
  %1354 = vmatprep.subr.mxu0 0.0
  %1355 = vmatpush1.msra.mxu0 0.0
  %1356 = vmatprep.subr.mxu0 0.0
  %1357 = vmatpush1.msra.mxu0 0.0
  %1358 = vmatprep.subr.mxu0 0.0
  %1359 = vmatpush1.msra.mxu0 0.0
  %1360 = vmatprep.subr.mxu0 0.0
  %1361 = vmatpush1.msra.mxu0 0.0
  %1362 = vmatprep.subr.mxu0 0.0
  %1363 = vmatpush1.msra.mxu0 0.0
  %1364 = vmatprep.subr.mxu0 0.0
  %1365 = vmatpush1.msra.mxu0 0.0
  %1366 = vmatprep.subr.mxu0 0.0
  %1367 = vmatpush1.msra.mxu0 0.0
  %1368 = vmatprep.subr.mxu0 0.0
  %1369 = vmatpush1.msra.mxu0 0.0
  %1370 = vmatprep.subr.mxu0 0.0
  %1371 = vmatpush1.msra.mxu0 0.0
  %1372 = vmatprep.subr.mxu0 0.0
  %1373 = vmatpush1.msra.mxu0 0.0
  %1374 = vmatprep.subr.mxu0 0.0
  %1375 = vmatpush1.msra.mxu0 0.0
  %1376 = vmatprep.subr.mxu0 0.0
  %1377 = vmatpush1.msra.mxu0 0.0
  %1378 = vmatprep.mubr.f32.mxu0 0.0
  %1379 = vmatmul.mubr.f32.gmra.mrb[0].mxu0 %v1312
  %v1380 = vpop.f32.mrb[0].mxu0
  %v1381 = vadd.f32 0.0, %v1380
  %v1382 = vpop.f32.mrb[0].mxu0
  %1383 = vdwg.mxu0
  %v1385 = vsel %vm122, %v1310, 0
  %1387 = vmatprep.subr.mxu0 0.0
  %1388 = vmatpush1.msra.mxu0 %v37
  %1389 = vmatprep.subr.mxu0 0.0
  %1390 = vmatpush1.msra.mxu0 %v38
  %1391 = vmatprep.subr.mxu0 0.0
  %1392 = vmatpush1.msra.mxu0 %v279
  %1393 = vmatprep.subr.mxu0 0.0
  %1394 = vmatpush1.msra.mxu0 0.0
  %1395 = vmatprep.subr.mxu0 0.0
  %1396 = vmatpush1.msra.mxu0 0.0
  %1397 = vmatprep.subr.mxu0 0.0
  %1398 = vmatpush1.msra.mxu0 0.0
  %1399 = vmatprep.subr.mxu0 0.0
  %1400 = vmatpush1.msra.mxu0 0.0
  %1401 = vmatprep.subr.mxu0 0.0
  %1402 = vmatpush1.msra.mxu0 0.0
  %1403 = vmatprep.subr.mxu0 0.0
  %1404 = vmatpush1.msra.mxu0 0.0
  %1405 = vmatprep.subr.mxu0 0.0
  %1406 = vmatpush1.msra.mxu0 0.0
  %1407 = vmatprep.subr.mxu0 0.0
  %1408 = vmatpush1.msra.mxu0 0.0
  %1409 = vmatprep.subr.mxu0 0.0
  %1410 = vmatpush1.msra.mxu0 0.0
  %1411 = vmatprep.subr.mxu0 0.0
  %1412 = vmatpush1.msra.mxu0 0.0
  %1413 = vmatprep.subr.mxu0 0.0
  %1414 = vmatpush1.msra.mxu0 0.0
  %1415 = vmatprep.subr.mxu0 0.0
  %1416 = vmatpush1.msra.mxu0 0.0
  %1417 = vmatprep.subr.mxu0 0.0
  %1418 = vmatpush1.msra.mxu0 0.0
  %1419 = vmatprep.subr.mxu0 0.0
  %1420 = vmatpush1.msra.mxu0 0.0
  %1421 = vmatprep.subr.mxu0 0.0
  %1422 = vmatpush1.msra.mxu0 0.0
  %1423 = vmatprep.subr.mxu0 0.0
  %1424 = vmatpush1.msra.mxu0 0.0
  %1425 = vmatprep.subr.mxu0 0.0
  %1426 = vmatpush1.msra.mxu0 0.0
  %1427 = vmatprep.subr.mxu0 0.0
  %1428 = vmatpush1.msra.mxu0 0.0
  %1429 = vmatprep.subr.mxu0 0.0
  %1430 = vmatpush1.msra.mxu0 0.0
  %1431 = vmatprep.subr.mxu0 0.0
  %1432 = vmatpush1.msra.mxu0 0.0
  %1433 = vmatprep.subr.mxu0 0.0
  %1434 = vmatpush1.msra.mxu0 0.0
  %1435 = vmatprep.subr.mxu0 0.0
  %1436 = vmatpush1.msra.mxu0 0.0
  %1437 = vmatprep.subr.mxu0 0.0
  %1438 = vmatpush1.msra.mxu0 0.0
  %1439 = vmatprep.subr.mxu0 0.0
  %1440 = vmatpush1.msra.mxu0 0.0
  %1441 = vmatprep.subr.mxu0 0.0
  %1442 = vmatpush1.msra.mxu0 0.0
  %1443 = vmatprep.subr.mxu0 0.0
  %1444 = vmatpush1.msra.mxu0 0.0
  %1445 = vmatprep.subr.mxu0 0.0
  %1446 = vmatpush1.msra.mxu0 0.0
  %1447 = vmatprep.subr.mxu0 0.0
  %1448 = vmatpush1.msra.mxu0 0.0
  %1449 = vmatprep.subr.mxu0 0.0
  %1450 = vmatpush1.msra.mxu0 0.0
  %1451 = vmatprep.mubr.f32.mxu0 0.0
  %1452 = vmatmul.mubr.f32.gmra.mrb[0].mxu0 %v1385
  %v1453 = vpop.f32.mrb[0].mxu0
  %v1454 = vadd.f32 %v1381, %v1453
  %v1455 = vpop.f32.mrb[0].mxu0
  %1456 = vdwg.mxu0
  %v1457 = vadd.f32 %v1454, %v355
  %v1458 = vtanh.pop %v1457
  %1459 = vmatprep.subr.mxu0 0.0
  %1460 = vmatpush1.msra.mxu0 %v34
  %1461 = vmatprep.subr.mxu0 0.0
  %1462 = vmatpush1.msra.mxu0 %v35
  %1463 = vmatprep.subr.mxu0 0.0
  %1464 = vmatpush1.msra.mxu0 %v128
  %1465 = vmatprep.subr.mxu0 0.0
  %1466 = vmatpush1.msra.mxu0 0.0
  %1467 = vmatprep.subr.mxu0 0.0
  %1468 = vmatpush1.msra.mxu0 0.0
  %1469 = vmatprep.subr.mxu0 0.0
  %1470 = vmatpush1.msra.mxu0 0.0
  %1471 = vmatprep.subr.mxu0 0.0
  %1472 = vmatpush1.msra.mxu0 0.0
  %1473 = vmatprep.subr.mxu0 0.0
  %1474 = vmatpush1.msra.mxu0 0.0
  %1475 = vmatprep.subr.mxu0 0.0
  %1476 = vmatpush1.msra.mxu0 0.0
  %1477 = vmatprep.subr.mxu0 0.0
  %1478 = vmatpush1.msra.mxu0 0.0
  %1479 = vmatprep.subr.mxu0 0.0
  %1480 = vmatpush1.msra.mxu0 0.0
  %1481 = vmatprep.subr.mxu0 0.0
  %1482 = vmatpush1.msra.mxu0 0.0
  %1483 = vmatprep.subr.mxu0 0.0
  %1484 = vmatpush1.msra.mxu0 0.0
  %1485 = vmatprep.subr.mxu0 0.0
  %1486 = vmatpush1.msra.mxu0 0.0
  %1487 = vmatprep.subr.mxu0 0.0
  %1488 = vmatpush1.msra.mxu0 0.0
  %1489 = vmatprep.subr.mxu0 0.0
  %1490 = vmatpush1.msra.mxu0 0.0
  %1491 = vmatprep.subr.mxu0 0.0
  %1492 = vmatpush1.msra.mxu0 0.0
  %1493 = vmatprep.subr.mxu0 0.0
  %1494 = vmatpush1.msra.mxu0 0.0
  %1495 = vmatprep.subr.mxu0 0.0
  %1496 = vmatpush1.msra.mxu0 0.0
  %1497 = vmatprep.subr.mxu0 0.0
  %1498 = vmatpush1.msra.mxu0 0.0
  %1499 = vmatprep.subr.mxu0 0.0
  %1500 = vmatpush1.msra.mxu0 0.0
  %1501 = vmatprep.subr.mxu0 0.0
  %1502 = vmatpush1.msra.mxu0 0.0
  %1503 = vmatprep.subr.mxu0 0.0
  %1504 = vmatpush1.msra.mxu0 0.0
  %1505 = vmatprep.subr.mxu0 0.0
  %1506 = vmatpush1.msra.mxu0 0.0
  %1507 = vmatprep.subr.mxu0 0.0
  %1508 = vmatpush1.msra.mxu0 0.0
  %1509 = vmatprep.subr.mxu0 0.0
  %1510 = vmatpush1.msra.mxu0 0.0
  %1511 = vmatprep.subr.mxu0 0.0
  %1512 = vmatpush1.msra.mxu0 0.0
  %1513 = vmatprep.subr.mxu0 0.0
  %1514 = vmatpush1.msra.mxu0 0.0
  %1515 = vmatprep.subr.mxu0 0.0
  %1516 = vmatpush1.msra.mxu0 0.0
  %1517 = vmatprep.subr.mxu0 0.0
  %1518 = vmatpush1.msra.mxu0 0.0
  %1519 = vmatprep.subr.mxu0 0.0
  %1520 = vmatpush1.msra.mxu0 0.0
  %1521 = vmatprep.subr.mxu0 0.0
  %1522 = vmatpush1.msra.mxu0 0.0
  %1523 = vmatprep.mubr.f32.mxu0 0.0
  %1524 = vmatmul.mubr.f32.gmra.mrb[0].mxu0 %v1385
  %v1525 = vpop.f32.mrb[0].mxu0
  %v1526 = vadd.f32 0.0, %v1525
  %v1527 = vpop.f32.mrb[0].mxu0
  %1528 = vdwg.mxu0
  %v1529 = vadd.f32 %v120, %v1526
  %v1530 = vtanh.pop %v1529
  %v1532 = vsel %vm122, %v1458, 0
  %1534 = vmatprep.subr.mxu0 0.0
  %1535 = vmatpush1.msra.mxu0 %v40
  %1536 = vmatprep.subr.mxu0 0.0
  %1537 = vmatpush1.msra.mxu0 %v41
  %1538 = vmatprep.subr.mxu0 0.0
  %1539 = vmatpush1.msra.mxu0 %v203
  %1540 = vmatprep.subr.mxu0 0.0
  %1541 = vmatpush1.msra.mxu0 0.0
  %1542 = vmatprep.subr.mxu0 0.0
  %1543 = vmatpush1.msra.mxu0 0.0
  %1544 = vmatprep.subr.mxu0 0.0
  %1545 = vmatpush1.msra.mxu0 0.0
  %1546 = vmatprep.subr.mxu0 0.0
  %1547 = vmatpush1.msra.mxu0 0.0
  %1548 = vmatprep.subr.mxu0 0.0
  %1549 = vmatpush1.msra.mxu0 0.0
  %1550 = vmatprep.subr.mxu0 0.0
  %1551 = vmatpush1.msra.mxu0 0.0
  %1552 = vmatprep.subr.mxu0 0.0
  %1553 = vmatpush1.msra.mxu0 0.0
  %1554 = vmatprep.subr.mxu0 0.0
  %1555 = vmatpush1.msra.mxu0 0.0
  %1556 = vmatprep.subr.mxu0 0.0
  %1557 = vmatpush1.msra.mxu0 0.0
  %1558 = vmatprep.subr.mxu0 0.0
  %1559 = vmatpush1.msra.mxu0 0.0
  %1560 = vmatprep.subr.mxu0 0.0
  %1561 = vmatpush1.msra.mxu0 0.0
  %1562 = vmatprep.subr.mxu0 0.0
  %1563 = vmatpush1.msra.mxu0 0.0
  %1564 = vmatprep.subr.mxu0 0.0
  %1565 = vmatpush1.msra.mxu0 0.0
  %1566 = vmatprep.subr.mxu0 0.0
  %1567 = vmatpush1.msra.mxu0 0.0
  %1568 = vmatprep.subr.mxu0 0.0
  %1569 = vmatpush1.msra.mxu0 0.0
  %1570 = vmatprep.subr.mxu0 0.0
  %1571 = vmatpush1.msra.mxu0 0.0
  %1572 = vmatprep.subr.mxu0 0.0
  %1573 = vmatpush1.msra.mxu0 0.0
  %1574 = vmatprep.subr.mxu0 0.0
  %1575 = vmatpush1.msra.mxu0 0.0
  %1576 = vmatprep.subr.mxu0 0.0
  %1577 = vmatpush1.msra.mxu0 0.0
  %1578 = vmatprep.subr.mxu0 0.0
  %1579 = vmatpush1.msra.mxu0 0.0
  %1580 = vmatprep.subr.mxu0 0.0
  %1581 = vmatpush1.msra.mxu0 0.0
  %1582 = vmatprep.subr.mxu0 0.0
  %1583 = vmatpush1.msra.mxu0 0.0
  %1584 = vmatprep.subr.mxu0 0.0
  %1585 = vmatpush1.msra.mxu0 0.0
  %1586 = vmatprep.subr.mxu0 0.0
  %1587 = vmatpush1.msra.mxu0 0.0
  %1588 = vmatprep.subr.mxu0 0.0
  %1589 = vmatpush1.msra.mxu0 0.0
  %1590 = vmatprep.subr.mxu0 0.0
  %1591 = vmatpush1.msra.mxu0 0.0
  %1592 = vmatprep.subr.mxu0 0.0
  %1593 = vmatpush1.msra.mxu0 0.0
  %1594 = vmatprep.subr.mxu0 0.0
  %1595 = vmatpush1.msra.mxu0 0.0
  %1596 = vmatprep.subr.mxu0 0.0
  %1597 = vmatpush1.msra.mxu0 0.0
  %1598 = vmatprep.mubr.f32.mxu0 0.0
  %1599 = vmatmul.mubr.f32.gmra.mrb[0].mxu0 %v1532
  %v1600 = vpop.f32.mrb[0].mxu0
  %v1601 = vadd.f32 0.0, %v1600
  %v1602 = vpop.f32.mrb[0].mxu0
  %1603 = vdwg.mxu0
  %v1605 = vsel %vm122, %v1530, 0
  %1607 = vmatprep.subr.mxu0 0.0
  %1608 = vmatpush1.msra.mxu0 %v37
  %1609 = vmatprep.subr.mxu0 0.0
  %1610 = vmatpush1.msra.mxu0 %v38
  %1611 = vmatprep.subr.mxu0 0.0
  %1612 = vmatpush1.msra.mxu0 %v279
  %1613 = vmatprep.subr.mxu0 0.0
  %1614 = vmatpush1.msra.mxu0 0.0
  %1615 = vmatprep.subr.mxu0 0.0
  %1616 = vmatpush1.msra.mxu0 0.0
  %1617 = vmatprep.subr.mxu0 0.0
  %1618 = vmatpush1.msra.mxu0 0.0
  %1619 = vmatprep.subr.mxu0 0.0
  %1620 = vmatpush1.msra.mxu0 0.0
  %1621 = vmatprep.subr.mxu0 0.0
  %1622 = vmatpush1.msra.mxu0 0.0
  %1623 = vmatprep.subr.mxu0 0.0
  %1624 = vmatpush1.msra.mxu0 0.0
  %1625 = vmatprep.subr.mxu0 0.0
  %1626 = vmatpush1.msra.mxu0 0.0
  %1627 = vmatprep.subr.mxu0 0.0
  %1628 = vmatpush1.msra.mxu0 0.0
  %1629 = vmatprep.subr.mxu0 0.0
  %1630 = vmatpush1.msra.mxu0 0.0
  %1631 = vmatprep.subr.mxu0 0.0
  %1632 = vmatpush1.msra.mxu0 0.0
  %1633 = vmatprep.subr.mxu0 0.0
  %1634 = vmatpush1.msra.mxu0 0.0
  %1635 = vmatprep.subr.mxu0 0.0
  %1636 = vmatpush1.msra.mxu0 0.0
  %1637 = vmatprep.subr.mxu0 0.0
  %1638 = vmatpush1.msra.mxu0 0.0
  %1639 = vmatprep.subr.mxu0 0.0
  %1640 = vmatpush1.msra.mxu0 0.0
  %1641 = vmatprep.subr.mxu0 0.0
  %1642 = vmatpush1.msra.mxu0 0.0
  %1643 = vmatprep.subr.mxu0 0.0
  %1644 = vmatpush1.msra.mxu0 0.0
  %1645 = vmatprep.subr.mxu0 0.0
  %1646 = vmatpush1.msra.mxu0 0.0
  %1647 = vmatprep.subr.mxu0 0.0
  %1648 = vmatpush1.msra.mxu0 0.0
  %1649 = vmatprep.subr.mxu0 0.0
  %1650 = vmatpush1.msra.mxu0 0.0
  %1651 = vmatprep.subr.mxu0 0.0
  %1652 = vmatpush1.msra.mxu0 0.0
  %1653 = vmatprep.subr.mxu0 0.0
  %1654 = vmatpush1.msra.mxu0 0.0
  %1655 = vmatprep.subr.mxu0 0.0
  %1656 = vmatpush1.msra.mxu0 0.0
  %1657 = vmatprep.subr.mxu0 0.0
  %1658 = vmatpush1.msra.mxu0 0.0
  %1659 = vmatprep.subr.mxu0 0.0
  %1660 = vmatpush1.msra.mxu0 0.0
  %1661 = vmatprep.subr.mxu0 0.0
  %1662 = vmatpush1.msra.mxu0 0.0
  %1663 = vmatprep.subr.mxu0 0.0
  %1664 = vmatpush1.msra.mxu0 0.0
  %1665 = vmatprep.subr.mxu0 0.0
  %1666 = vmatpush1.msra.mxu0 0.0
  %1667 = vmatprep.subr.mxu0 0.0
  %1668 = vmatpush1.msra.mxu0 0.0
  %1669 = vmatprep.subr.mxu0 0.0
  %1670 = vmatpush1.msra.mxu0 0.0
  %1671 = vmatprep.mubr.f32.mxu0 0.0
  %1672 = vmatmul.mubr.f32.gmra.mrb[0].mxu0 %v1605
  %v1673 = vpop.f32.mrb[0].mxu0
  %v1674 = vadd.f32 %v1601, %v1673
  %v1675 = vpop.f32.mrb[0].mxu0
  %1676 = vdwg.mxu0
  %v1677 = vadd.f32 %v1674, %v355
  %v1678 = vtanh.pop %v1677
  %1679 = vmatprep.subr.mxu0 0.0
  %1680 = vmatpush1.msra.mxu0 %v34
  %1681 = vmatprep.subr.mxu0 0.0
  %1682 = vmatpush1.msra.mxu0 %v35
  %1683 = vmatprep.subr.mxu0 0.0
  %1684 = vmatpush1.msra.mxu0 %v128
  %1685 = vmatprep.subr.mxu0 0.0
  %1686 = vmatpush1.msra.mxu0 0.0
  %1687 = vmatprep.subr.mxu0 0.0
  %1688 = vmatpush1.msra.mxu0 0.0
  %1689 = vmatprep.subr.mxu0 0.0
  %1690 = vmatpush1.msra.mxu0 0.0
  %1691 = vmatprep.subr.mxu0 0.0
  %1692 = vmatpush1.msra.mxu0 0.0
  %1693 = vmatprep.subr.mxu0 0.0
  %1694 = vmatpush1.msra.mxu0 0.0
  %1695 = vmatprep.subr.mxu0 0.0
  %1696 = vmatpush1.msra.mxu0 0.0
  %1697 = vmatprep.subr.mxu0 0.0
  %1698 = vmatpush1.msra.mxu0 0.0
  %1699 = vmatprep.subr.mxu0 0.0
  %1700 = vmatpush1.msra.mxu0 0.0
  %1701 = vmatprep.subr.mxu0 0.0
  %1702 = vmatpush1.msra.mxu0 0.0
  %1703 = vmatprep.subr.mxu0 0.0
  %1704 = vmatpush1.msra.mxu0 0.0
  %1705 = vmatprep.subr.mxu0 0.0
  %1706 = vmatpush1.msra.mxu0 0.0
  %1707 = vmatprep.subr.mxu0 0.0
  %1708 = vmatpush1.msra.mxu0 0.0
  %1709 = vmatprep.subr.mxu0 0.0
  %1710 = vmatpush1.msra.mxu0 0.0
  %1711 = vmatprep.subr.mxu0 0.0
  %1712 = vmatpush1.msra.mxu0 0.0
  %1713 = vmatprep.subr.mxu0 0.0
  %1714 = vmatpush1.msra.mxu0 0.0
  %1715 = vmatprep.subr.mxu0 0.0
  %1716 = vmatpush1.msra.mxu0 0.0
  %1717 = vmatprep.subr.mxu0 0.0
  %1718 = vmatpush1.msra.mxu0 0.0
  %1719 = vmatprep.subr.mxu0 0.0
  %1720 = vmatpush1.msra.mxu0 0.0
  %1721 = vmatprep.subr.mxu0 0.0
  %1722 = vmatpush1.msra.mxu0 0.0
  %1723 = vmatprep.subr.mxu0 0.0
  %1724 = vmatpush1.msra.mxu0 0.0
  %1725 = vmatprep.subr.mxu0 0.0
  %1726 = vmatpush1.msra.mxu0 0.0
  %1727 = vmatprep.subr.mxu0 0.0
  %1728 = vmatpush1.msra.mxu0 0.0
  %1729 = vmatprep.subr.mxu0 0.0
  %1730 = vmatpush1.msra.mxu0 0.0
  %1731 = vmatprep.subr.mxu0 0.0
  %1732 = vmatpush1.msra.mxu0 0.0
  %1733 = vmatprep.subr.mxu0 0.0
  %1734 = vmatpush1.msra.mxu0 0.0
  %1735 = vmatprep.subr.mxu0 0.0
  %1736 = vmatpush1.msra.mxu0 0.0
  %1737 = vmatprep.subr.mxu0 0.0
  %1738 = vmatpush1.msra.mxu0 0.0
  %1739 = vmatprep.subr.mxu0 0.0
  %1740 = vmatpush1.msra.mxu0 0.0
  %1741 = vmatprep.subr.mxu0 0.0
  %1742 = vmatpush1.msra.mxu0 0.0
  %1743 = vmatprep.mubr.f32.mxu0 0.0
  %1744 = vmatmul.mubr.f32.gmra.mrb[0].mxu0 %v1605
  %v1745 = vpop.f32.mrb[0].mxu0
  %v1746 = vadd.f32 0.0, %v1745
  %v1747 = vpop.f32.mrb[0].mxu0
  %1748 = vdwg.mxu0
  %v1749 = vadd.f32 %v121, %v1746
  %v1750 = vtanh.pop %v1749
  %v1752 = vsel %vm122, %v1678, 0
  %1754 = vmatprep.subr.mxu0 0.0
  %1755 = vmatpush1.msra.mxu0 %v40
  %1756 = vmatprep.subr.mxu0 0.0
  %1757 = vmatpush1.msra.mxu0 %v41
  %1758 = vmatprep.subr.mxu0 0.0
  %1759 = vmatpush1.msra.mxu0 %v203
  %1760 = vmatprep.subr.mxu0 0.0
  %1761 = vmatpush1.msra.mxu0 0.0
  %1762 = vmatprep.subr.mxu0 0.0
  %1763 = vmatpush1.msra.mxu0 0.0
  %1764 = vmatprep.subr.mxu0 0.0
  %1765 = vmatpush1.msra.mxu0 0.0
  %1766 = vmatprep.subr.mxu0 0.0
  %1767 = vmatpush1.msra.mxu0 0.0
  %1768 = vmatprep.subr.mxu0 0.0
  %1769 = vmatpush1.msra.mxu0 0.0
  %1770 = vmatprep.subr.mxu0 0.0
  %1771 = vmatpush1.msra.mxu0 0.0
  %1772 = vmatprep.subr.mxu0 0.0
  %1773 = vmatpush1.msra.mxu0 0.0
  %1774 = vmatprep.subr.mxu0 0.0
  %1775 = vmatpush1.msra.mxu0 0.0
  %1776 = vmatprep.subr.mxu0 0.0
  %1777 = vmatpush1.msra.mxu0 0.0
  %1778 = vmatprep.subr.mxu0 0.0
  %1779 = vmatpush1.msra.mxu0 0.0
  %1780 = vmatprep.subr.mxu0 0.0
  %1781 = vmatpush1.msra.mxu0 0.0
  %1782 = vmatprep.subr.mxu0 0.0
  %1783 = vmatpush1.msra.mxu0 0.0
  %1784 = vmatprep.subr.mxu0 0.0
  %1785 = vmatpush1.msra.mxu0 0.0
  %1786 = vmatprep.subr.mxu0 0.0
  %1787 = vmatpush1.msra.mxu0 0.0
  %1788 = vmatprep.subr.mxu0 0.0
  %1789 = vmatpush1.msra.mxu0 0.0
  %1790 = vmatprep.subr.mxu0 0.0
  %1791 = vmatpush1.msra.mxu0 0.0
  %1792 = vmatprep.subr.mxu0 0.0
  %1793 = vmatpush1.msra.mxu0 0.0
  %1794 = vmatprep.subr.mxu0 0.0
  %1795 = vmatpush1.msra.mxu0 0.0
  %1796 = vmatprep.subr.mxu0 0.0
  %1797 = vmatpush1.msra.mxu0 0.0
  %1798 = vmatprep.subr.mxu0 0.0
  %1799 = vmatpush1.msra.mxu0 0.0
  %1800 = vmatprep.subr.mxu0 0.0
  %1801 = vmatpush1.msra.mxu0 0.0
  %1802 = vmatprep.subr.mxu0 0.0
  %1803 = vmatpush1.msra.mxu0 0.0
  %1804 = vmatprep.subr.mxu0 0.0
  %1805 = vmatpush1.msra.mxu0 0.0
  %1806 = vmatprep.subr.mxu0 0.0
  %1807 = vmatpush1.msra.mxu0 0.0
  %1808 = vmatprep.subr.mxu0 0.0
  %1809 = vmatpush1.msra.mxu0 0.0
  %1810 = vmatprep.subr.mxu0 0.0
  %1811 = vmatpush1.msra.mxu0 0.0
  %1812 = vmatprep.subr.mxu0 0.0
  %1813 = vmatpush1.msra.mxu0 0.0
  %1814 = vmatprep.subr.mxu0 0.0
  %1815 = vmatpush1.msra.mxu0 0.0
  %1816 = vmatprep.subr.mxu0 0.0
  %1817 = vmatpush1.msra.mxu0 0.0
  %1818 = vmatprep.mubr.f32.mxu0 0.0
  %1819 = vmatmul.mubr.f32.gmra.mrb[0].mxu0 %v1752
  %v1820 = vpop.f32.mrb[0].mxu0
  %v1821 = vadd.f32 0.0, %v1820
  %v1822 = vpop.f32.mrb[0].mxu0
  %1823 = vdwg.mxu0
  %v1825 = vsel %vm122, %v1750, 0
  %1827 = vmatprep.subr.mxu0 0.0
  %1828 = vmatpush1.msra.mxu0 %v37
  %1829 = vmatprep.subr.mxu0 0.0
  %1830 = vmatpush1.msra.mxu0 %v38
  %1831 = vmatprep.subr.mxu0 0.0
  %1832 = vmatpush1.msra.mxu0 %v279
  %1833 = vmatprep.subr.mxu0 0.0
  %1834 = vmatpush1.msra.mxu0 0.0
  %1835 = vmatprep.subr.mxu0 0.0
  %1836 = vmatpush1.msra.mxu0 0.0
  %1837 = vmatprep.subr.mxu0 0.0
  %1838 = vmatpush1.msra.mxu0 0.0
  %1839 = vmatprep.subr.mxu0 0.0
  %1840 = vmatpush1.msra.mxu0 0.0
  %1841 = vmatprep.subr.mxu0 0.0
  %1842 = vmatpush1.msra.mxu0 0.0
  %1843 = vmatprep.subr.mxu0 0.0
  %1844 = vmatpush1.msra.mxu0 0.0
  %1845 = vmatprep.subr.mxu0 0.0
  %1846 = vmatpush1.msra.mxu0 0.0
  %1847 = vmatprep.subr.mxu0 0.0
  %1848 = vmatpush1.msra.mxu0 0.0
  %1849 = vmatprep.subr.mxu0 0.0
  %1850 = vmatpush1.msra.mxu0 0.0
  %1851 = vmatprep.subr.mxu0 0.0
  %1852 = vmatpush1.msra.mxu0 0.0
  %1853 = vmatprep.subr.mxu0 0.0
  %1854 = vmatpush1.msra.mxu0 0.0
  %1855 = vmatprep.subr.mxu0 0.0
  %1856 = vmatpush1.msra.mxu0 0.0
  %1857 = vmatprep.subr.mxu0 0.0
  %1858 = vmatpush1.msra.mxu0 0.0
  %1859 = vmatprep.subr.mxu0 0.0
  %1860 = vmatpush1.msra.mxu0 0.0
  %1861 = vmatprep.subr.mxu0 0.0
  %1862 = vmatpush1.msra.mxu0 0.0
  %1863 = vmatprep.subr.mxu0 0.0
  %1864 = vmatpush1.msra.mxu0 0.0
  %1865 = vmatprep.subr.mxu0 0.0
  %1866 = vmatpush1.msra.mxu0 0.0
  %1867 = vmatprep.subr.mxu0 0.0
  %1868 = vmatpush1.msra.mxu0 0.0
  %1869 = vmatprep.subr.mxu0 0.0
  %1870 = vmatpush1.msra.mxu0 0.0
  %1871 = vmatprep.subr.mxu0 0.0
  %1872 = vmatpush1.msra.mxu0 0.0
  %1873 = vmatprep.subr.mxu0 0.0
  %1874 = vmatpush1.msra.mxu0 0.0
  %1875 = vmatprep.subr.mxu0 0.0
  %1876 = vmatpush1.msra.mxu0 0.0
  %1877 = vmatprep.subr.mxu0 0.0
  %1878 = vmatpush1.msra.mxu0 0.0
  %1879 = vmatprep.subr.mxu0 0.0
  %1880 = vmatpush1.msra.mxu0 0.0
  %1881 = vmatprep.subr.mxu0 0.0
  %1882 = vmatpush1.msra.mxu0 0.0
  %1883 = vmatprep.subr.mxu0 0.0
  %1884 = vmatpush1.msra.mxu0 0.0
  %1885 = vmatprep.subr.mxu0 0.0
  %1886 = vmatpush1.msra.mxu0 0.0
  %1887 = vmatprep.subr.mxu0 0.0
  %1888 = vmatpush1.msra.mxu0 0.0
  %1889 = vmatprep.subr.mxu0 0.0
  %1890 = vmatpush1.msra.mxu0 0.0
  %1891 = vmatprep.mubr.f32.mxu0 0.0
  %1892 = vmatmul.mubr.f32.gmra.mrb[0].mxu0 %v1825
  %v1893 = vpop.f32.mrb[0].mxu0
  %v1894 = vadd.f32 %v1821, %v1893
  %v1895 = vpop.f32.mrb[0].mxu0
  %1896 = vdwg.mxu0
  %v1897 = vadd.f32 %v1894, %v355
  %v1898 = vtanh.pop %v1897
  %v1899 = vld [vmem:[%s7] sm:$0x1]
  %v1901 = vlaneseq
  %v1902 = vshrl.u32 %v1901, 7
  %v1903 = vsub.s32 0, %v1902
  %v1904 = vrot.slane %v1899, %v1903
  %v1906 = vmul.f32 %v1898, %v1904
  %v1907 = vsel %vm122, %v1906, 0.0
  %1908 = vadd.xlane.f32.xlu0 %v1907
  %v1909 = vpop.xlane.xlu0 %1908
  %v1910 = vld [vmem:[#allocation2] sm:$0x1]
  %v1912 = vlaneseq
  %v1913 = vshrl.u32 %v1912, 7
  %v1914 = vsub.s32 0, %v1913
  %v1915 = vrot.slane %v1910, %v1914
  %v1917 = vadd.f32 %v1909, %v1915
  %vm1918 = vcmask 7168
  %1919 = vst.msk [vmem:[%s9] sm:$0xff] %vm1918, %v1917
  // Predicated region
  $region38: #{simple_rnn_forward.1} parent=0 // pred_check
    _
  $region39: #{simple_rnn_forward.1} parent=0 // pred_check_branch
    %1921 = sbr.rel (0) target = $region41
  $region40: #{simple_rnn_forward.1} parent=0 // pred_region
    _
  $region41: #{simple_rnn_forward.1} parent=0 // pred_fallthru
    _
  // Predicated region
  $region42: #{simple_rnn_forward.1} parent=0 // pred_check
    _
  $region43: #{simple_rnn_forward.1} parent=0 // pred_check_branch
    %1923 = sbr.rel (0) target = $region45
  $region44: #{simple_rnn_forward.1} parent=0 // pred_region
    _
  $region45: #{simple_rnn_forward.1} parent=0 // pred_fallthru
    _

</llo_original>
